<compile_context>
chip_gen: v6e
topology: v6e:2x2x1
jax: 0.10.0
libtpu: 0.0.40
codegen_flags: <defaults>
</compile_context>

<pallas_src>
import numpy as np
import jax
import jax.numpy as jnp
from jax import lax
from jax.experimental import pallas as pl
from jax.experimental.pallas import tpu as pltpu

PI = 3.1415926

C_IN = 64            # head input channels
HID = 32             # linear_last hidden width
N_CLS = 2            # cls head out
N_SCR = 6            # scores head out (2 iou + 2x2 dir)
N_REG = 20           # reg head out (2 anchors x 10)
N_OUT = N_CLS + N_SCR + N_REG      # 28 fused head outputs
N_ANCH_ROWS = 26     # precomputed anchor rows (see build_anchor_decode_table)
N_SLAB = 18          # cls(2) | iou(2) | xyz x2 (6) | wlh x2 (6) | r x2 (2)
BN = 1024            # voxel (lane) tile

# Permutation of the fused head outputs (columns of W2 / entries of b2) into
# the grouped row order the kernel wants.  Original fused column order:
#   0:2 cls | 2:4 iou | 4:8 dir logits [d0_a0, d1_a0, d0_a1, d1_a1]
#   8:18 reg anchor0 [xt,yt,zt,wt,lt,ht,vt0,vt1,vt2,vt3] | 18:28 reg anchor1
# Kernel row order:
#   0:4   cls0 cls1 iou0 iou1            (one grouped sigmoid)
#   4:8   d0_a0 d0_a1 d1_a0 d1_a1        (grouped dir compare)
#   8:14  xt0 yt0 zt0 xt1 yt1 zt1        (one grouped mul-add)
#  14:20  wt0 lt0 ht0 wt1 lt1 ht1        (one grouped exp*scale)
#  20:24  vt2_0 vt2_1 vt3_0 vt3_1        (atan2 y-args)
#  24:28  vt0_0 vt0_1 vt1_0 vt1_1        (atan2 x-args)
OUT_PERM = np.array([0, 1, 2, 3,
                     4, 6, 5, 7,
                     8, 9, 10, 18, 19, 20,
                     11, 12, 13, 21, 22, 23,
                     16, 26, 17, 27,
                     14, 24, 15, 25], dtype=np.int32)

# Columns of the transposed (N, 18) output slab forming the (N, 2, 7) boxes.
BOX_COLS = np.array([4, 5, 6, 10, 11, 12, 16,     # anchor 0: x y z w l h r
                     7, 8, 9, 13, 14, 15, 17],    # anchor 1
                    dtype=np.int32)


# ------------------------------------------------------------------ helpers
def _sigmoid(x):
    # reciprocal on the EUP (approx error ~1e-4, far under the test tolerance)
    return pl.reciprocal(1.0 + jnp.exp(-x), approx=True)


def _atan_poly(z):
    # minimax polynomial for atan(z), z in [0, 1]  (abs err ~1e-6)
    z2 = z * z
    p = jnp.float32(-0.01172120)
    p = p * z2 + jnp.float32(0.05265332)
    p = p * z2 + jnp.float32(-0.11643287)
    p = p * z2 + jnp.float32(0.19354346)
    p = p * z2 + jnp.float32(-0.33262347)
    p = p * z2 + jnp.float32(0.99997726)
    return z * p


def _atan2(y, x):
    # atan2 from basic VPU/EUP ops (range reduction + quadrant fix).
    ax = jnp.abs(x)
    ay = jnp.abs(y)
    mx = jnp.maximum(ax, ay)
    mn = jnp.minimum(ax, ay)
    # clamp at 1e-6 (not 1e-30): approx reciprocal of a tiny value can overflow
    # to inf and produce 0*inf = NaN when both args are ~0.
    z = mn * pl.reciprocal(jnp.maximum(mx, jnp.float32(1e-6)), approx=True)
    r = _atan_poly(z)
    r = jnp.where(ay > ax, jnp.float32(0.5 * PI) - r, r)
    r = jnp.where(x < 0.0, jnp.float32(PI) - r, r)
    r = jnp.where(y < 0.0, -r, r)
    return r


# ------------------------------------------------------------------ kernel
def det_head_decode_kernel(feat_ref, w1t_ref, b1_ref, w2t_ref, b2_ref,
                           anch_ref, out_ref, out_sc):
    # Fused heads.  feat tile stays in its natural (BN, 64) layout; the
    # contraction on dim-64 of both operands does the "transpose" on-chip:
    #   h = W1^T @ feat^T  ->  (96, BN), f32 accumulation of bf16 inputs.
    h = lax.dot_general(w1t_ref[...], feat_ref[...],
                        dimension_numbers=(((1,), (1,)), ((), ())),
                        preferred_element_type=jnp.float32)          # (96, BN)
    h = jnp.maximum(h + b1_ref[...], 0.0)

    # Second matmul is tiny (28x96, W2 block-diagonal) -> kept f32; the MXU is
    # not the binding unit here.  Park the result in VMEM scratch so the decode
    # reads grouped row slices instead of holding the (28, BN) value live.
    out_sc[...] = jnp.dot(w2t_ref[...], h,
                          preferred_element_type=jnp.float32) + b2_ref[...]

    # ---- grouped decode: every op below runs on a multi-row lane-dense block.
    # rows 0:4 = [cls0, cls1, iou0, iou1] -> one grouped sigmoid + one store
    out_ref[0:4, :] = _sigmoid(out_sc[0:4, :])

    off_a = anch_ref[0:6, :]       # [xa0 ya0 za0 xa1 ya1 za1]
    scl_a = anch_ref[6:12, :]      # [diag0 diag0 ha0 diag1 diag1 ha1]
    scl_b = anch_ref[12:18, :]     # [wa0 la0 ha0 wa1 la1 ha1]
    sin4 = anch_ref[18:22, :]      # [sin(ra0) sin(ra1) -sin(ra0) -sin(ra1)]
    cos4 = anch_ref[22:26, :]      # [cos(ra0) cos(ra1) -cos(ra0) -cos(ra1)]

    # x/y/z: one grouped fused multiply-add over 6 rows, one store
    out_ref[4:10, :] = out_sc[8:14, :] * scl_a + off_a
    # w/l/h: one grouped exp over 6 rows, one store
    out_ref[10:16, :] = jnp.exp(out_sc[14:20, :]) * scl_b
    # heading: one grouped atan2 over 4 rows (2 dir hypotheses x 2 anchors),
    # then dir-argmax select (sigmoid dropped: monotonic, argmax unchanged).
    rg4 = _atan2(out_sc[20:24, :] + sin4, out_sc[24:28, :] + cos4)
    pick_hi = out_sc[6:8, :] > out_sc[4:6, :]          # d1 > d0, per anchor
    out_ref[16:18, :] = jnp.where(pick_hi, rg4[2:4, :], rg4[0:2, :])


# ------------------------------------------------------------------ wrapper
def build_anchor_decode_table(anchors):
    """anchors: (H, W, 2, 7) -> (26, H*W) precomputed, sign-baked anchor rows."""
    a = anchors.reshape(-1, 2, 7).astype(jnp.float32)              # (M, 2, 7)
    xa, ya, za = a[..., 0], a[..., 1], a[..., 2]
    wa, la, ha, ra = a[..., 3], a[..., 4], a[..., 5], a[..., 6]
    diag = jnp.sqrt(la * la + wa * wa)
    c, s = jnp.cos(ra), jnp.sin(ra)
    rows = [
        xa[:, 0], ya[:, 0], za[:, 0], xa[:, 1], ya[:, 1], za[:, 1],          # offA
        diag[:, 0], diag[:, 0], ha[:, 0], diag[:, 1], diag[:, 1], ha[:, 1],  # sclA
        wa[:, 0], la[:, 0], ha[:, 0], wa[:, 1], la[:, 1], ha[:, 1],          # sclB
        s[:, 0], s[:, 1], -s[:, 0], -s[:, 1],                                # sin4
        c[:, 0], c[:, 1], -c[:, 0], -c[:, 1],                                # cos4
    ]
    return jnp.stack(rows, axis=0)                                  # (26, M)


def detection_s1_heads_decode(feat, anchor_table, flat_idx, w1, b1, w2, b2, *,
                              bn=BN):
    """Fused DetectionS1 heads + box decode.

    feat:          (N, 64) active-voxel features (cast to bf16 for the MXU).
    anchor_table:  (26, H*W) from build_anchor_decode_table.
    flat_idx:      (N,) int32 flat grid index (xy[1]*W + xy[2]) per voxel.
    w1, b1:        fused first-layer weights (64, 96), (96,) of the 3 heads.
    w2, b2:        fused (block-diagonal) second-layer weights (96, 28), (28,).

    Returns sigmoid(cls) (N,2), sigmoid(iou) (N,2), decoded boxes (N,2,7).
    """
    n = feat.shape[0]
    # keep >= 2 grid steps when possible so dimension_semantics=("parallel",)
    # can shard across both v7x TensorCores; bn stays a multiple of 128.
    while bn > 128 and n <= bn:
        bn //= 2
    n_pad = ((n + bn - 1) // bn) * bn

    feat = feat.astype(jnp.bfloat16)                       # (N, 64), no transpose
    flat_idx = flat_idx.astype(jnp.int32)
    if n_pad != n:
        feat = jnp.pad(feat, ((0, n_pad - n), (0, 0)))
        flat_idx = jnp.pad(flat_idx, (0, n_pad - n))
    # gather anchors directly in (rows, N) layout -> no relayout pass
    anch_rows = anchor_table.astype(jnp.float32)[:, flat_idx]       # (26, n_pad)

    w1t = jnp.asarray(w1).T.astype(jnp.bfloat16)           # (96, 64)
    b1c = jnp.asarray(b1, jnp.float32).reshape(3 * HID, 1)
    w2t = jnp.asarray(w2, jnp.float32).T[OUT_PERM, :]      # (28, 96) grouped rows
    b2c = jnp.asarray(b2, jnp.float32).reshape(-1)[OUT_PERM].reshape(N_OUT, 1)

    grid = (n_pad // bn,)
    full = lambda shape: pl.BlockSpec(shape, lambda i: (0, 0))

    slab = pl.pallas_call(
        det_head_decode_kernel,
        out_shape=jax.ShapeDtypeStruct((N_SLAB, n_pad), jnp.float32),
        grid=grid,
        in_specs=[
            pl.BlockSpec((bn, C_IN), lambda i: (i, 0)),          # feat row tile
            full((3 * HID, C_IN)),                               # W1^T  (bf16)
            full((3 * HID, 1)),                                  # b1
            full((N_OUT, 3 * HID)),                              # W2^T (permuted)
            full((N_OUT, 1)),                                    # b2   (permuted)
            pl.BlockSpec((N_ANCH_ROWS, bn), lambda i: (0, i)),   # anchor rows
        ],
        out_specs=pl.BlockSpec((N_SLAB, bn), lambda i: (0, i)),  # fused slab
        scratch_shapes=[pltpu.VMEM((N_OUT, bn), jnp.float32)],
        compiler_params=pltpu.CompilerParams(dimension_semantics=("parallel",)),
    )(feat, w1t, b1c, w2t, b2c, anch_rows)

    # single fused transpose + static column reorder (instead of 3 transposes)
    slab_t = slab[:, :n].T                                   # (n, 18)
    cls_s = slab_t[:, 0:2]
    iou_s = slab_t[:, 2:4]
    boxes = slab_t[:, BOX_COLS].reshape(n, 2, 7)
    return cls_s, iou_s, boxes


# ------------------------------------------------------------------ glue
def generate_anchors(grid_h, grid_w, x_min, y_min, stride, voxel_size,
                     box_z, box_dim, box_angles):
    xs = (x_min + jnp.arange(grid_h, dtype=jnp.float32) * stride) * voxel_size
    ys = (y_min + jnp.arange(grid_w, dtype=jnp.float32) * stride) * voxel_size
    xx, yy = jnp.meshgrid(xs, ys, indexing="ij")
    anchors = jnp.zeros((grid_h, grid_w, len(box_angles), 7), jnp.float32)
    anchors = anchors.at[..., 0].set(xx[..., None])
    anchors = anchors.at[..., 1].set(yy[..., None])
    anchors = anchors.at[..., 2].set(box_z)
    anchors = anchors.at[..., 3].set(box_dim[0])
    anchors = anchors.at[..., 4].set(box_dim[1])
    anchors = anchors.at[..., 5].set(box_dim[2])
    for i, a in enumerate(box_angles):
        anchors = anchors.at[:, :, i, 6].set(a / 180.0 * PI)
    return anchors


def reference(feat, anch_g, w1, b1, w2, b2):
    # Pure-JAX f32 reference of the module's head + decode_boxes math.
    h = jnp.maximum(feat @ w1 + b1, 0.0)
    out = h @ w2 + b2
    n = feat.shape[0]
    cls = jax.nn.sigmoid(out[:, :2])
    iou = jax.nn.sigmoid(out[:, 2:4])
    dir_sc = jax.nn.sigmoid(out[:, 4:8]).reshape(n, 2, 2)
    reg = out[:, 8:28].reshape(n, 2, 10)
    xa, ya, za = anch_g[..., 0], anch_g[..., 1], anch_g[..., 2]
    wa, la, ha, ra = anch_g[..., 3], anch_g[..., 4], anch_g[..., 5], anch_g[..., 6]
    diag = jnp.sqrt(la ** 2 + wa ** 2)
    xg = reg[..., 0] * diag + xa
    yg = reg[..., 1] * diag + ya
    zg = reg[..., 2] * ha + za
    wg = jnp.exp(reg[..., 3]) * wa
    lg = jnp.exp(reg[..., 4]) * la
    hg = jnp.exp(reg[..., 5]) * ha
    ra_ext = jnp.stack([ra, ra + PI], -1)
    va = jnp.concatenate([jnp.cos(ra_ext), jnp.sin(ra_ext)], -1)
    vg = reg[..., 6:10] + va
    rg = jnp.arctan2(vg[..., 2:4], vg[..., 0:2])
    dirs = jnp.argmax(dir_sc, -1)
    rg_sel = jnp.take_along_axis(rg, dirs[..., None], -1)[..., 0]
    boxes = jnp.stack([xg, yg, zg, wg, lg, hg, rg_sel], -1)
    return cls, iou, boxes


if __name__ == "__main__":
    # config consistent with the det_r branch of __init__
    det_r, voxel_size, stride = 3.2, 0.4, 2
    grid_size = int(det_r / voxel_size / stride * 2)          # 8
    rx = int(det_r / voxel_size)
    x_max = (rx - 1) // stride * stride
    x_min = -(x_max + stride)
    box_z, box_dim, box_angles = -1.0, (1.6, 3.9, 1.56), (0.0, 90.0)

    N = 2048  # active sparse voxels (2 grid steps at BN=1024 -> both v7x TCs)

    key = jax.random.PRNGKey(0)
    ks = jax.random.split(key, 10)
    # the detection head consumes bf16 features (halves the dominant HBM stream)
    feat = jax.random.normal(ks[0], (N, C_IN), jnp.float32).astype(jnp.bfloat16)

    # deterministic synthetic head weights (Linear->ReLU->Linear per head)
    def lin(k, i, o, s=0.2):
        kw, kb = jax.random.split(k)
        return (jax.random.normal(kw, (i, o), jnp.float32) * s,
                jax.random.normal(kb, (o,), jnp.float32) * s)

    w1_cls, b1_cls = lin(ks[1], C_IN, HID)
    w1_scr, b1_scr = lin(ks[2], C_IN, HID)
    w1_reg, b1_reg = lin(ks[3], C_IN, HID)
    w2_cls, b2_cls = lin(ks[4], HID, N_CLS)
    w2_scr, b2_scr = lin(ks[5], HID, N_SCR)
    w2_reg, b2_reg = lin(ks[6], HID, N_REG)

    w1 = jnp.concatenate([w1_cls, w1_scr, w1_reg], axis=1)         # (64, 96)
    b1 = jnp.concatenate([b1_cls, b1_scr, b1_reg])                 # (96,)
    w2 = jnp.zeros((3 * HID, N_OUT), jnp.float32)                  # block-diagonal
    w2 = w2.at[0:HID, 0:2].set(w2_cls)
    w2 = w2.at[HID:2 * HID, 2:8].set(w2_scr)
    w2 = w2.at[2 * HID:3 * HID, 8:28].set(w2_reg)
    b2 = jnp.concatenate([b2_cls, b2_scr, b2_reg])                 # (28,)

    # anchors grid + per-voxel indices (stand-in for update_coords / self.xy)
    anchors = generate_anchors(grid_size, grid_size, x_min, x_min, stride,
                               voxel_size, box_z, box_dim, box_angles)
    ix = jax.random.randint(ks[7], (N,), 0, grid_size)
    iy = jax.random.randint(ks[8], (N,), 0, grid_size)
    flat_idx = ix * grid_size + iy
    anchor_table = build_anchor_decode_table(anchors)              # (26, 64)
    anch_g = anchors[ix, iy]                                       # (N, 2, 7) (ref)

    cls_s, iou_s, boxes = detection_s1_heads_decode(
        feat, anchor_table, flat_idx, w1, b1, w2, b2)
    jax.block_until_ready(boxes)

    # Correctness: reference runs the same mixed-precision math in plain JAX
    # (feat and W1 quantized to bf16 -- the kernel's MXU inputs -- everything
    # else f32), so the comparison isolates kernel-implementation error.
    feat32 = feat.astype(jnp.float32)
    w1_q = w1.astype(jnp.bfloat16).astype(jnp.float32)
    rcls, riou, rboxes = reference(feat32, anch_g, w1_q, b1, w2, b2)
    np.testing.assert_allclose(np.asarray(cls_s), np.asarray(rcls), rtol=1e-2, atol=5e-3)
    np.testing.assert_allclose(np.asarray(iou_s), np.asarray(riou), rtol=1e-2, atol=5e-3)
    np.testing.assert_allclose(np.asarray(boxes), np.asarray(rboxes), rtol=1e-2, atol=5e-3)

    # get_stage_one_boxes filtering (static-shape mask part)
    dims = boxes.reshape(-1, 7)[:, 3:6]
    keep = jnp.all((dims > 1) & (dims < 10), axis=-1) & (cls_s.reshape(-1) > 0.5)
    jax.block_until_ready(keep)
    # TODO(synk): nms_gpu (rotated BEV NMS) and box_fusion produce dynamic-shaped,
    # data-dependent outputs and have no clean fixed-shape Pallas equivalent.
    # TODO(synk): the MinkowskiEngine sparse convs (self.convs) feeding these
    # heads are out of scope for this kernel.

    print("KERNEL_OK")
</pallas_src>

<mosaic_0001>
module attributes {stable_mosaic.version = 11 : i64} {
  func.func @det_head_decode_kernel(%arg0: i32, %arg1: memref<1024x64xbf16, #tpu.memory_space<vmem>>, %arg2: memref<96x64xbf16, #tpu.memory_space<vmem>>, %arg3: memref<96x1xf32, #tpu.memory_space<vmem>>, %arg4: memref<28x96xf32, #tpu.memory_space<vmem>>, %arg5: memref<28x1xf32, #tpu.memory_space<vmem>>, %arg6: memref<26x1024xf32, #tpu.memory_space<vmem>>, %arg7: memref<18x1024xf32, #tpu.memory_space<vmem>>, %arg8: memref<28x1024xf32, #tpu.memory_space<vmem>>) attributes {dimension_semantics = [#tpu.dimension_semantics<parallel>], iteration_bounds = array<i64: 2>, scalar_prefetch = 0 : i64, scratch_operands = 1 : i64, tpu.core_type = #tpu.core_type<tc>, window_params = [{transform_indices = @transform_0, window_bounds = array<i64: 1024, 64>}, {pipeline_mode = #tpu.pipeline_mode<synchronous>, transform_indices = @transform_1, window_bounds = array<i64: 96, 64>}, {pipeline_mode = #tpu.pipeline_mode<synchronous>, transform_indices = @transform_2, window_bounds = array<i64: 96, 1>}, {pipeline_mode = #tpu.pipeline_mode<synchronous>, transform_indices = @transform_3, window_bounds = array<i64: 28, 96>}, {pipeline_mode = #tpu.pipeline_mode<synchronous>, transform_indices = @transform_4, window_bounds = array<i64: 28, 1>}, {transform_indices = @transform_5, window_bounds = array<i64: 26, 1024>}, {transform_indices = @transform_6, window_bounds = array<i64: 18, 1024>}]} {
    %c0 = arith.constant 0 : index
    %c0_0 = arith.constant 0 : index
    %0 = vector.load %arg2[%c0, %c0_0] : memref<96x64xbf16, #tpu.memory_space<vmem>>, vector<96x64xbf16>
    %c0_1 = arith.constant 0 : index
    %c0_2 = arith.constant 0 : index
    %1 = vector.load %arg1[%c0_1, %c0_2] : memref<1024x64xbf16, #tpu.memory_space<vmem>>, vector<1024x64xbf16>
    %cst = arith.constant dense<0.000000e+00> : vector<96x1024xf32>
    %2 = tpu.matmul %0, %1, %cst {dimension_numbers = #tpu.dot_dimension_numbers<[1], [1], [0], [0], [0, 0, 1, 0], [], []>} : vector<96x64xbf16>, vector<1024x64xbf16>, vector<96x1024xf32> -> vector<96x1024xf32>
    %c0_3 = arith.constant 0 : index
    %c0_4 = arith.constant 0 : index
    %3 = vector.load %arg3[%c0_3, %c0_4] : memref<96x1xf32, #tpu.memory_space<vmem>>, vector<96x1xf32>
    %4 = vector.broadcast %3 : vector<96x1xf32> to vector<96x1024xf32>
    %5 = arith.addf %2, %4 : vector<96x1024xf32>
    %cst_5 = arith.constant 0.000000e+00 : f32
    %6 = vector.broadcast %cst_5 : f32 to vector<96x1024xf32>
    %7 = arith.maximumf %5, %6 : vector<96x1024xf32>
    %c0_6 = arith.constant 0 : index
    %c0_7 = arith.constant 0 : index
    %8 = vector.load %arg4[%c0_6, %c0_7] : memref<28x96xf32, #tpu.memory_space<vmem>>, vector<28x96xf32>
    %cst_8 = arith.constant dense<0.000000e+00> : vector<28x1024xf32>
    %9 = tpu.matmul %8, %7, %cst_8 {dimension_numbers = #tpu.dot_dimension_numbers<[1], [0], [0], [1], [0, 0, 1, 1], [], []>} : vector<28x96xf32>, vector<96x1024xf32>, vector<28x1024xf32> -> vector<28x1024xf32>
    %c0_9 = arith.constant 0 : index
    %c0_10 = arith.constant 0 : index
    %10 = vector.load %arg5[%c0_9, %c0_10] : memref<28x1xf32, #tpu.memory_space<vmem>>, vector<28x1xf32>
    %11 = vector.broadcast %10 : vector<28x1xf32> to vector<28x1024xf32>
    %12 = arith.addf %9, %11 : vector<28x1024xf32>
    %c0_11 = arith.constant 0 : index
    %c0_12 = arith.constant 0 : index
    %13 = vector.load %arg8[%c0_11, %c0_12] : memref<28x1024xf32, #tpu.memory_space<vmem>>, vector<28x1024xf32>
    tpu.vector_store %arg8[%c0_11, %c0_12], %12 {strides = array<i32>} : memref<28x1024xf32, #tpu.memory_space<vmem>>, vector<28x1024xf32>,
    %c0_13 = arith.constant 0 : index
    %c0_14 = arith.constant 0 : index
    %14 = vector.load %arg8[%c0_13, %c0_14] : memref<28x1024xf32, #tpu.memory_space<vmem>>, vector<4x1024xf32>
    %cst_15 = arith.constant 0.000000e+00 : f32
    %15 = vector.broadcast %cst_15 : f32 to vector<4x1024xf32>
    %16 = arith.subf %15, %14 : vector<4x1024xf32>
    %17 = math.exp %16 : vector<4x1024xf32>
    %cst_16 = arith.constant 1.000000e+00 : f32
    %18 = vector.broadcast %cst_16 : f32 to vector<4x1024xf32>
    %19 = arith.addf %18, %17 : vector<4x1024xf32>
    %20 = tpu.reciprocal %19 {approx = true} : vector<4x1024xf32> -> vector<4x1024xf32>
    %c0_17 = arith.constant 0 : index
    %c0_18 = arith.constant 0 : index
    %21 = vector.load %arg7[%c0_17, %c0_18] : memref<18x1024xf32, #tpu.memory_space<vmem>>, vector<4x1024xf32>
    tpu.vector_store %arg7[%c0_17, %c0_18], %20 {strides = array<i32>} : memref<18x1024xf32, #tpu.memory_space<vmem>>, vector<4x1024xf32>,
    %c0_19 = arith.constant 0 : index
    %c0_20 = arith.constant 0 : index
    %22 = vector.load %arg6[%c0_19, %c0_20] : memref<26x1024xf32, #tpu.memory_space<vmem>>, vector<6x1024xf32>
    %c6 = arith.constant 6 : index
    %c0_21 = arith.constant 0 : index
    %23 = vector.load %arg6[%c6, %c0_21] : memref<26x1024xf32, #tpu.memory_space<vmem>>, vector<6x1024xf32>
    %c12 = arith.constant 12 : index
    %c0_22 = arith.constant 0 : index
    %24 = vector.load %arg6[%c12, %c0_22] : memref<26x1024xf32, #tpu.memory_space<vmem>>, vector<6x1024xf32>
    %c18 = arith.constant 18 : index
    %c0_23 = arith.constant 0 : index
    %25 = vector.load %arg6[%c18, %c0_23] : memref<26x1024xf32, #tpu.memory_space<vmem>>, vector<4x1024xf32>
    %c22 = arith.constant 22 : index
    %c0_24 = arith.constant 0 : index
    %26 = vector.load %arg6[%c22, %c0_24] : memref<26x1024xf32, #tpu.memory_space<vmem>>, vector<4x1024xf32>
    %c8 = arith.constant 8 : index
    %c0_25 = arith.constant 0 : index
    %27 = vector.load %arg8[%c8, %c0_25] : memref<28x1024xf32, #tpu.memory_space<vmem>>, vector<6x1024xf32>
    %28 = arith.mulf %27, %23 : vector<6x1024xf32>
    %29 = arith.addf %28, %22 : vector<6x1024xf32>
    %c4 = arith.constant 4 : index
    %c0_26 = arith.constant 0 : index
    %30 = vector.load %arg7[%c4, %c0_26] : memref<18x1024xf32, #tpu.memory_space<vmem>>, vector<6x1024xf32>
    tpu.vector_store %arg7[%c4, %c0_26], %29 {strides = array<i32>} : memref<18x1024xf32, #tpu.memory_space<vmem>>, vector<6x1024xf32>,
    %c14 = arith.constant 14 : index
    %c0_27 = arith.constant 0 : index
    %31 = vector.load %arg8[%c14, %c0_27] : memref<28x1024xf32, #tpu.memory_space<vmem>>, vector<6x1024xf32>
    %32 = math.exp %31 : vector<6x1024xf32>
    %33 = arith.mulf %32, %24 : vector<6x1024xf32>
    %c10 = arith.constant 10 : index
    %c0_28 = arith.constant 0 : index
    %34 = vector.load %arg7[%c10, %c0_28] : memref<18x1024xf32, #tpu.memory_space<vmem>>, vector<6x1024xf32>
    tpu.vector_store %arg7[%c10, %c0_28], %33 {strides = array<i32>} : memref<18x1024xf32, #tpu.memory_space<vmem>>, vector<6x1024xf32>,
    %c20 = arith.constant 20 : index
    %c0_29 = arith.constant 0 : index
    %35 = vector.load %arg8[%c20, %c0_29] : memref<28x1024xf32, #tpu.memory_space<vmem>>, vector<4x1024xf32>
    %36 = arith.addf %35, %25 : vector<4x1024xf32>
    %c24 = arith.constant 24 : index
    %c0_30 = arith.constant 0 : index
    %37 = vector.load %arg8[%c24, %c0_30] : memref<28x1024xf32, #tpu.memory_space<vmem>>, vector<4x1024xf32>
    %38 = arith.addf %37, %26 : vector<4x1024xf32>
    %39 = math.absf %38 : vector<4x1024xf32>
    %40 = math.absf %36 : vector<4x1024xf32>
    %41 = arith.maximumf %39, %40 : vector<4x1024xf32>
    %42 = arith.minimumf %39, %40 : vector<4x1024xf32>
    %cst_31 = arith.constant 9.99999997E-7 : f32
    %43 = vector.broadcast %cst_31 : f32 to vector<4x1024xf32>
    %44 = arith.maximumf %41, %43 : vector<4x1024xf32>
    %45 = tpu.reciprocal %44 {approx = true} : vector<4x1024xf32> -> vector<4x1024xf32>
    %46 = arith.mulf %42, %45 : vector<4x1024xf32>
    %47 = arith.mulf %46, %46 : vector<4x1024xf32>
    %cst_32 = arith.constant -1.172120e-02 : f32
    %48 = vector.broadcast %cst_32 : f32 to vector<4x1024xf32>
    %49 = arith.mulf %48, %47 : vector<4x1024xf32>
    %cst_33 = arith.constant 0.0526533201 : f32
    %50 = vector.broadcast %cst_33 : f32 to vector<4x1024xf32>
    %51 = arith.addf %49, %50 : vector<4x1024xf32>
    %52 = arith.mulf %51, %47 : vector<4x1024xf32>
    %cst_34 = arith.constant -0.116432868 : f32
    %53 = vector.broadcast %cst_34 : f32 to vector<4x1024xf32>
    %54 = arith.addf %52, %53 : vector<4x1024xf32>
    %55 = arith.mulf %54, %47 : vector<4x1024xf32>
    %cst_35 = arith.constant 0.193543464 : f32
    %56 = vector.broadcast %cst_35 : f32 to vector<4x1024xf32>
    %57 = arith.addf %55, %56 : vector<4x1024xf32>
    %58 = arith.mulf %57, %47 : vector<4x1024xf32>
    %cst_36 = arith.constant -0.332623482 : f32
    %59 = vector.broadcast %cst_36 : f32 to vector<4x1024xf32>
    %60 = arith.addf %58, %59 : vector<4x1024xf32>
    %61 = arith.mulf %60, %47 : vector<4x1024xf32>
    %cst_37 = arith.constant 0.999977231 : f32
    %62 = vector.broadcast %cst_37 : f32 to vector<4x1024xf32>
    %63 = arith.addf %61, %62 : vector<4x1024xf32>
    %64 = arith.mulf %46, %63 : vector<4x1024xf32>
    %65 = arith.cmpf ogt, %40, %39 : vector<4x1024xf32>
    %cst_38 = arith.constant 1.57079625 : f32
    %66 = vector.broadcast %cst_38 : f32 to vector<4x1024xf32>
    %67 = arith.subf %66, %64 : vector<4x1024xf32>
    %68 = arith.select %65, %67, %64 : vector<4x1024xi1>, vector<4x1024xf32>
    %cst_39 = arith.constant 0.000000e+00 : f32
    %69 = vector.broadcast %cst_39 : f32 to vector<4x1024xf32>
    %70 = arith.cmpf olt, %38, %69 : vector<4x1024xf32>
    %cst_40 = arith.constant 3.1415925 : f32
    %71 = vector.broadcast %cst_40 : f32 to vector<4x1024xf32>
    %72 = arith.subf %71, %68 : vector<4x1024xf32>
    %73 = arith.select %70, %72, %68 : vector<4x1024xi1>, vector<4x1024xf32>
    %cst_41 = arith.constant 0.000000e+00 : f32
    %74 = vector.broadcast %cst_41 : f32 to vector<4x1024xf32>
    %75 = arith.cmpf olt, %36, %74 : vector<4x1024xf32>
    %cst_42 = arith.constant 0.000000e+00 : f32
    %76 = vector.broadcast %cst_42 : f32 to vector<4x1024xf32>
    %77 = arith.subf %76, %73 : vector<4x1024xf32>
    %78 = arith.select %75, %77, %73 : vector<4x1024xi1>, vector<4x1024xf32>
    %c6_43 = arith.constant 6 : index
    %c0_44 = arith.constant 0 : index
    %79 = vector.load %arg8[%c6_43, %c0_44] : memref<28x1024xf32, #tpu.memory_space<vmem>>, vector<2x1024xf32>
    %c4_45 = arith.constant 4 : index
    %c0_46 = arith.constant 0 : index
    %80 = vector.load %arg8[%c4_45, %c0_46] : memref<28x1024xf32, #tpu.memory_space<vmem>>, vector<2x1024xf32>
    %81 = arith.cmpf ogt, %79, %80 : vector<2x1024xf32>
    %82 = vector.extract_strided_slice %78 {offsets = [2, 0], sizes = [2, 1024], strides = [1, 1]} : vector<4x1024xf32> to vector<2x1024xf32>
    %83 = vector.extract_strided_slice %78 {offsets = [0, 0], sizes = [2, 1024], strides = [1, 1]} : vector<4x1024xf32> to vector<2x1024xf32>
    %84 = arith.select %81, %82, %83 : vector<2x1024xi1>, vector<2x1024xf32>
    %c16 = arith.constant 16 : index
    %c0_47 = arith.constant 0 : index
    %85 = vector.load %arg7[%c16, %c0_47] : memref<18x1024xf32, #tpu.memory_space<vmem>>, vector<2x1024xf32>
    tpu.vector_store %arg7[%c16, %c0_47], %84 {strides = array<i32>} : memref<18x1024xf32, #tpu.memory_space<vmem>>, vector<2x1024xf32>,
    return
  }
  func.func @transform_0(%arg0: i32) -> (i32, i32) {
    %c0_i32 = arith.constant 0 : i32
    %c0_i32_0 = arith.constant 0 : i32
    return %arg0, %c0_i32 : i32, i32
  }
  func.func @transform_1(%arg0: i32) -> (i32, i32) {
    %c0_i32 = arith.constant 0 : i32
    %c0_i32_0 = arith.constant 0 : i32
    %c0_i32_1 = arith.constant 0 : i32
    return %c0_i32, %c0_i32_0 : i32, i32
  }
  func.func @transform_2(%arg0: i32) -> (i32, i32) {
    %c0_i32 = arith.constant 0 : i32
    %c0_i32_0 = arith.constant 0 : i32
    %c0_i32_1 = arith.constant 0 : i32
    return %c0_i32, %c0_i32_0 : i32, i32
  }
  func.func @transform_3(%arg0: i32) -> (i32, i32) {
    %c0_i32 = arith.constant 0 : i32
    %c0_i32_0 = arith.constant 0 : i32
    %c0_i32_1 = arith.constant 0 : i32
    return %c0_i32, %c0_i32_0 : i32, i32
  }
  func.func @transform_4(%arg0: i32) -> (i32, i32) {
    %c0_i32 = arith.constant 0 : i32
    %c0_i32_0 = arith.constant 0 : i32
    %c0_i32_1 = arith.constant 0 : i32
    return %c0_i32, %c0_i32_0 : i32, i32
  }
  func.func @transform_5(%arg0: i32) -> (i32, i32) {
    %c0_i32 = arith.constant 0 : i32
    %c0_i32_0 = arith.constant 0 : i32
    return %c0_i32, %arg0 : i32, i32
  }
  func.func @transform_6(%arg0: i32) -> (i32, i32) {
    %c0_i32 = arith.constant 0 : i32
    %c0_i32_0 = arith.constant 0 : i32
    return %c0_i32, %arg0 : i32, i32
  }
}

</mosaic_0001>

<llo_original>
// kernel: tpu_custom_call.1
$region0: #{tpu_custom_call.1}
  #allocation0 [shape = 'u32[]', space=smem, size = 0x4, offset = 0x4, fixed_abs, tag = 'smem constant byte address 0x4 - core index']
  #allocation1 [shape = 'u32[144,128]{1,0:T(1,128)}', space=vmem, size = 0x12000, scoped, tag = 'internal scratch']
  #allocation2 [shape = 'f32[28,1024]{1,0:T(8,128)}', space=vmem, size = 0x20000, scoped, tag = 'scratch operand']
  %s0 = inlined_call_operand.vmem [shape: bf16[2048,64], index: 0, kind: input, shape index: {}]
  %s1 = inlined_call_operand.vmem [shape: bf16[96,64], index: 1, kind: input, shape index: {}]
  %s2 = inlined_call_operand.vmem [shape: f32[96,1], index: 2, kind: input, shape index: {}]
  %s3 = inlined_call_operand.vmem [shape: f32[28,96], index: 3, kind: input, shape index: {}]
  %s4 = inlined_call_operand.vmem [shape: f32[28,1], index: 4, kind: input, shape index: {}]
  %s5 = inlined_call_operand.vmem [shape: f32[26,2048], index: 5, kind: input, shape index: {}]
  %s6 = inlined_call_operand.hbm [shape: f32[18,2048], index: 6, kind: output, shape index: {}]
  %s7 = sld [smem:[#allocation0]]
  $region80: #{tpu_custom_call.1} parent=0
    _
  %s9 = ssub.s32 1, %s7
  %s10 = scalar_select 0, %s9, %s7
  $region1: #{tpu_custom_call.1} parent=0
    #allocation3 [shape = 'u8[262144]{0}', space=vmem, size = 0x40000, scoped, tag = 'input window, operand 5']
    #allocation4 [shape = 'u8[196608]{0}', space=vmem, size = 0x30000, scoped, tag = 'output window, operand 0']
    #allocation5 [shape = 's32[2]{0}', space=sflag, size = 0x8, scoped, tag = 'scoped memory for tpu_custom_call.1']
    %11 = vsyncpa [#allocation5], 0
    %s12 = scalar_lea.sflag [#allocation5], 1
    %13 = vsyncpa %s12, 0
    loop: start=0, step=1, limit=4
    $region2: #{tpu_custom_call.1} parent=1 // loop_pre_header
      _
    $region3: #{tpu_custom_call.1} parent=1 // loop_header
      %s15 = sphi 0, %s19
      %p16 = scmp.ge.s32.totalorder %s15, 4
      %s25 = sphi 0, %s27
      %s28 = sphi 0, %s25
      %s29 = sphi 0, %s28
      %s45 = sphi 0, %s29
      %s49 = sphi 0, %s49
      %s51 = sphi 0, %s49
      %s52 = sphi 0, %s51
      %s66 = sphi 0, %s52
      %s70 = sphi 0, %s70
      %s72 = sphi 0, %s70
      %s73 = sphi 0, %s72
      %s87 = sphi 0, %s73
      %s91 = sphi 0, %s91
      %s93 = sphi 0, %s91
      %s94 = sphi 0, %s93
      %s108 = sphi 0, %s94
      %s112 = sphi 0, %s112
      %s114 = sphi 0, %s112
      %s115 = sphi 0, %s114
      %s129 = sphi 0, %s115
      %s135 = sphi 0, %s137
      %s138 = sphi 0, %s135
      %s139 = sphi 0, %s138
      %s155 = sphi 0, %s139
      %s161 = sphi 0, %s163
      %s164 = sphi 0, %s161
      %s165 = sphi 0, %s164
      %s181 = sphi 0, %s165
    $region4: #{tpu_custom_call.1} parent=1 // loop_header_branch
      %18 = sbr.rel (%p16) target = $region8
    $region5: #{tpu_custom_call.1} parent=1 // loop_body
      %s20 = ssub.s32 %s15, 1
      %s21 = ssub.s32 %s15, 2
      %s22 = sadd.s32 %s15, 1
      %s23 = ssub.s32 %s15, %s22
      %p24 = scmp.eq.s32.totalorder %s23, 0
      %s26 = sadd.s32 %s25, 1
      %s27 = scalar_select %p24, %s25, %s26
      %p30 = pneg %p24
      %p31 = scmp.eq.s32.totalorder %s15, 1
      %p32 = por %p30, %p31
      %p33 = scmp.ne.s32.totalorder %s25, %s28
      %p34 = scmp.eq.s32.totalorder %s15, 0
      %p35 = por %p33, %p34
      %p36 = scmp.ne.s32.totalorder %s25, %s28
      %p37 = scmp.eq.s32.totalorder %s20, 1
      %p38 = por %p36, %p37
      %p39 = scmp.ne.s32.totalorder %s28, %s29
      %p40 = scmp.eq.s32.totalorder %s20, 0
      %p41 = por %p39, %p40
      %p42 = scmp.ne.s32.totalorder %s28, %s29
      %p43 = scmp.eq.s32.totalorder %s21, 1
      %p44 = por %p42, %p43
      %p46 = scmp.ne.s32.totalorder %s29, %s45
      %p47 = scmp.eq.s32.totalorder %s21, 0
      %p48 = por %p46, %p47
      %s50 = sadd.s32 %s49, 1
      %p53 = scmp.eq.s32.totalorder %s15, 1
      %p54 = scmp.ne.s32.totalorder %s49, %s51
      %p55 = scmp.eq.s32.totalorder %s15, 0
      %p56 = por %p54, %p55
      %p57 = scmp.ne.s32.totalorder %s49, %s51
      %p58 = scmp.eq.s32.totalorder %s20, 1
      %p59 = por %p57, %p58
      %p60 = scmp.ne.s32.totalorder %s51, %s52
      %p61 = scmp.eq.s32.totalorder %s20, 0
      %p62 = por %p60, %p61
      %p63 = scmp.ne.s32.totalorder %s51, %s52
      %p64 = scmp.eq.s32.totalorder %s21, 1
      %p65 = por %p63, %p64
      %p67 = scmp.ne.s32.totalorder %s52, %s66
      %p68 = scmp.eq.s32.totalorder %s21, 0
      %p69 = por %p67, %p68
      %s71 = sadd.s32 %s70, 1
      %p74 = scmp.eq.s32.totalorder %s15, 1
      %p75 = scmp.ne.s32.totalorder %s70, %s72
      %p76 = scmp.eq.s32.totalorder %s15, 0
      %p77 = por %p75, %p76
      %p78 = scmp.ne.s32.totalorder %s70, %s72
      %p79 = scmp.eq.s32.totalorder %s20, 1
      %p80 = por %p78, %p79
      %p81 = scmp.ne.s32.totalorder %s72, %s73
      %p82 = scmp.eq.s32.totalorder %s20, 0
      %p83 = por %p81, %p82
      %p84 = scmp.ne.s32.totalorder %s72, %s73
      %p85 = scmp.eq.s32.totalorder %s21, 1
      %p86 = por %p84, %p85
      %p88 = scmp.ne.s32.totalorder %s73, %s87
      %p89 = scmp.eq.s32.totalorder %s21, 0
      %p90 = por %p88, %p89
      %s92 = sadd.s32 %s91, 1
      %p95 = scmp.eq.s32.totalorder %s15, 1
      %p96 = scmp.ne.s32.totalorder %s91, %s93
      %p97 = scmp.eq.s32.totalorder %s15, 0
      %p98 = por %p96, %p97
      %p99 = scmp.ne.s32.totalorder %s91, %s93
      %p100 = scmp.eq.s32.totalorder %s20, 1
      %p101 = por %p99, %p100
      %p102 = scmp.ne.s32.totalorder %s93, %s94
      %p103 = scmp.eq.s32.totalorder %s20, 0
      %p104 = por %p102, %p103
      %p105 = scmp.ne.s32.totalorder %s93, %s94
      %p106 = scmp.eq.s32.totalorder %s21, 1
      %p107 = por %p105, %p106
      %p109 = scmp.ne.s32.totalorder %s94, %s108
      %p110 = scmp.eq.s32.totalorder %s21, 0
      %p111 = por %p109, %p110
      %s113 = sadd.s32 %s112, 1
      %p116 = scmp.eq.s32.totalorder %s15, 1
      %p117 = scmp.ne.s32.totalorder %s112, %s114
      %p118 = scmp.eq.s32.totalorder %s15, 0
      %p119 = por %p117, %p118
      %p120 = scmp.ne.s32.totalorder %s112, %s114
      %p121 = scmp.eq.s32.totalorder %s20, 1
      %p122 = por %p120, %p121
      %p123 = scmp.ne.s32.totalorder %s114, %s115
      %p124 = scmp.eq.s32.totalorder %s20, 0
      %p125 = por %p123, %p124
      %p126 = scmp.ne.s32.totalorder %s114, %s115
      %p127 = scmp.eq.s32.totalorder %s21, 1
      %p128 = por %p126, %p127
      %p130 = scmp.ne.s32.totalorder %s115, %s129
      %p131 = scmp.eq.s32.totalorder %s21, 0
      %p132 = por %p130, %p131
      %s133 = ssub.s32 %s15, %s22
      %p134 = scmp.eq.s32.totalorder %s133, 0
      %s136 = sadd.s32 %s135, 1
      %s137 = scalar_select %p134, %s135, %s136
      %p140 = pneg %p134
      %p141 = scmp.eq.s32.totalorder %s15, 1
      %p142 = por %p140, %p141
      %p143 = scmp.ne.s32.totalorder %s135, %s138
      %p144 = scmp.eq.s32.totalorder %s15, 0
      %p145 = por %p143, %p144
      %p146 = scmp.ne.s32.totalorder %s135, %s138
      %p147 = scmp.eq.s32.totalorder %s20, 1
      %p148 = por %p146, %p147
      %p149 = scmp.ne.s32.totalorder %s138, %s139
      %p150 = scmp.eq.s32.totalorder %s20, 0
      %p151 = por %p149, %p150
      %p152 = scmp.ne.s32.totalorder %s138, %s139
      %p153 = scmp.eq.s32.totalorder %s21, 1
      %p154 = por %p152, %p153
      %p156 = scmp.ne.s32.totalorder %s139, %s155
      %p157 = scmp.eq.s32.totalorder %s21, 0
      %p158 = por %p156, %p157
      %s159 = ssub.s32 %s15, %s22
      %p160 = scmp.eq.s32.totalorder %s159, 0
      %s162 = sadd.s32 %s161, 1
      %s163 = scalar_select %p160, %s161, %s162
      %p166 = pneg %p160
      %p167 = scmp.eq.s32.totalorder %s15, 1
      %p168 = por %p166, %p167
      %p169 = scmp.ne.s32.totalorder %s161, %s164
      %p170 = scmp.eq.s32.totalorder %s15, 0
      %p171 = por %p169, %p170
      %p172 = scmp.ne.s32.totalorder %s161, %s164
      %p173 = scmp.eq.s32.totalorder %s20, 1
      %p174 = por %p172, %p173
      %p175 = scmp.ne.s32.totalorder %s164, %s165
      %p176 = scmp.eq.s32.totalorder %s20, 0
      %p177 = por %p175, %p176
      %p178 = scmp.ne.s32.totalorder %s164, %s165
      %p179 = scmp.eq.s32.totalorder %s21, 1
      %p180 = por %p178, %p179
      %p182 = scmp.ne.s32.totalorder %s165, %s181
      %p183 = scmp.eq.s32.totalorder %s21, 0
      %p184 = por %p182, %p183
      %p185 = scmp.le.s32.totalorder 1, %s15
      %p186 = scmp.lt.s32.totalorder %s15, 3
      %p187 = pnand %p185, %p186
      %p188 = pneg %p187
      // Predicated region
      $region9: #{tpu_custom_call.1} parent=5 // pred_check
        _
      $region10: #{tpu_custom_call.1} parent=5 // pred_check_branch
        %190 = sbr.rel (%p187) target = $region12
      $region11: #{tpu_custom_call.1} parent=5 // pred_region
        %s191 = ssub.s32 %s15, 1
        // Predicated region
        $region13: #{tpu_custom_call.1} parent=11 // pred_check
          %p192 = pneg %p62
        $region14: #{tpu_custom_call.1} parent=11 // pred_check_branch
          %194 = sbr.rel (%p192) target = $region16
        $region15: #{tpu_custom_call.1} parent=11 // pred_region
          _
        $region16: #{tpu_custom_call.1} parent=11 // pred_fallthru
          _
        // Predicated region
        $region17: #{tpu_custom_call.1} parent=11 // pred_check
          %p195 = pneg %p83
        $region18: #{tpu_custom_call.1} parent=11 // pred_check_branch
          %197 = sbr.rel (%p195) target = $region20
        $region19: #{tpu_custom_call.1} parent=11 // pred_region
          _
        $region20: #{tpu_custom_call.1} parent=11 // pred_fallthru
          _
        // Predicated region
        $region21: #{tpu_custom_call.1} parent=11 // pred_check
          %p198 = pneg %p104
        $region22: #{tpu_custom_call.1} parent=11 // pred_check_branch
          %200 = sbr.rel (%p198) target = $region24
        $region23: #{tpu_custom_call.1} parent=11 // pred_region
          _
        $region24: #{tpu_custom_call.1} parent=11 // pred_fallthru
          _
        // Predicated region
        $region25: #{tpu_custom_call.1} parent=11 // pred_check
          %p201 = pneg %p125
        $region26: #{tpu_custom_call.1} parent=11 // pred_check_branch
          %203 = sbr.rel (%p201) target = $region28
        $region27: #{tpu_custom_call.1} parent=11 // pred_region
          _
        $region28: #{tpu_custom_call.1} parent=11 // pred_fallthru
          _
      $region12: #{tpu_custom_call.1} parent=5 // pred_fallthru
        _
      %p204 = scmp.lt.s32.totalorder %s15, 2
      // Predicated region
      $region29: #{tpu_custom_call.1} parent=5 // pred_check
        %p205 = pneg %p204
      $region30: #{tpu_custom_call.1} parent=5 // pred_check_branch
        %207 = sbr.rel (%p205) target = $region32
      $region31: #{tpu_custom_call.1} parent=5 // pred_region
        // Predicated region
        $region33: #{tpu_custom_call.1} parent=31 // pred_check
          %p208 = pneg %p35
        $region34: #{tpu_custom_call.1} parent=31 // pred_check_branch
          %210 = sbr.rel (%p208) target = $region36
        $region35: #{tpu_custom_call.1} parent=31 // pred_region
          %s211 = smul.u32 128, %s15
          %p212 = scmp.lt.s32.totalorder %s211, 255
          %s213 = scalar_select %p212, %s211, 255
          %s214 = smul.addr %s213, 4
          %s215 = scalar_lea.vmem %s0, %s214
          %s216 = smul.u32 128, %s15
        $region36: #{tpu_custom_call.1} parent=31 // pred_fallthru
          _
        // Predicated region
        $region37: #{tpu_custom_call.1} parent=31 // pred_check
          %p217 = pneg %p145
        $region38: #{tpu_custom_call.1} parent=31 // pred_check_branch
          %219 = sbr.rel (%p217) target = $region40
        $region39: #{tpu_custom_call.1} parent=31 // pred_region
          %s220 = sand.u32 %s135, 1
          %s221 = sand.u32 %s135, 1
          %s222 = smul.addr %s221, 256
          %s223 = scalar_lea.vmem [#allocation3], %s222
          %s224 = smul.u32 8, %s15
          %s225 = smul.addr %s224, 8
          %s226 = scalar_lea.vmem %s5, %s225
          // Predicated region
          $region41: #{tpu_custom_call.1} parent=39 // pred_check
            _
          $region42: #{tpu_custom_call.1} parent=39 // pred_check_branch
            %228 = sbr.rel (0) target = $region44
          $region43: #{tpu_custom_call.1} parent=39 // pred_region
            // Predicated region
            $region45: #{tpu_custom_call.1} parent=43 // pred_check
              _
            $region46: #{tpu_custom_call.1} parent=43 // pred_check_branch
              %230 = sbr.rel (0) target = $region48
            $region47: #{tpu_custom_call.1} parent=43 // pred_region
              loop: start=0, step=1, limit=1
              $region49: #{tpu_custom_call.1} parent=47 // loop_pre_header
                _
              $region50: #{tpu_custom_call.1} parent=47 // loop_header
                %s232 = sphi 0, %s236
                %p233 = scmp.ge.s32.totalorder %s232, 1
                %s237 = sphi %s226, %s226
                %s238 = sphi %s223, %s223
              $region51: #{tpu_custom_call.1} parent=47 // loop_header_branch
                %235 = sbr.rel (%p233) target = $region55
              $region52: #{tpu_custom_call.1} parent=47 // loop_body
                %v239 = vld [vmem:[%s237] sm:$0xff]
                %240 = vst [vmem:[%s238] sm:$0xff] %v239
                %v241 = vld [vmem:[%s237 + $0x8] sm:$0xff]
                %242 = vst [vmem:[%s238 + $0x8] sm:$0xff] %v241
                %v243 = vld [vmem:[%s237 + $0x10] sm:$0xff]
                %244 = vst [vmem:[%s238 + $0x10] sm:$0xff] %v243
                %v245 = vld [vmem:[%s237 + $0x18] sm:$0xff]
                %246 = vst [vmem:[%s238 + $0x18] sm:$0xff] %v245
                %v247 = vld [vmem:[%s237 + $0x20] sm:$0xff]
                %248 = vst [vmem:[%s238 + $0x20] sm:$0xff] %v247
                %v249 = vld [vmem:[%s237 + $0x28] sm:$0xff]
                %250 = vst [vmem:[%s238 + $0x28] sm:$0xff] %v249
                %v251 = vld [vmem:[%s237 + $0x30] sm:$0xff]
                %252 = vst [vmem:[%s238 + $0x30] sm:$0xff] %v251
                %v253 = vld [vmem:[%s237 + $0x38] sm:$0xff]
                %254 = vst [vmem:[%s238 + $0x38] sm:$0xff] %v253
                %v255 = vld [vmem:[%s237 + $0x80] sm:$0xff]
                %256 = vst [vmem:[%s238 + $0x40] sm:$0xff] %v255
                %v257 = vld [vmem:[%s237 + $0x88] sm:$0xff]
                %258 = vst [vmem:[%s238 + $0x48] sm:$0xff] %v257
                %v259 = vld [vmem:[%s237 + $0x90] sm:$0xff]
                %260 = vst [vmem:[%s238 + $0x50] sm:$0xff] %v259
                %v261 = vld [vmem:[%s237 + $0x98] sm:$0xff]
                %262 = vst [vmem:[%s238 + $0x58] sm:$0xff] %v261
                %v263 = vld [vmem:[%s237 + $0xa0] sm:$0xff]
                %264 = vst [vmem:[%s238 + $0x60] sm:$0xff] %v263
                %v265 = vld [vmem:[%s237 + $0xa8] sm:$0xff]
                %266 = vst [vmem:[%s238 + $0x68] sm:$0xff] %v265
                %v267 = vld [vmem:[%s237 + $0xb0] sm:$0xff]
                %268 = vst [vmem:[%s238 + $0x70] sm:$0xff] %v267
                %v269 = vld [vmem:[%s237 + $0xb8] sm:$0xff]
                %270 = vst [vmem:[%s238 + $0x78] sm:$0xff] %v269
                %v271 = vld [vmem:[%s237 + $0x100] sm:$0xff]
                %272 = vst [vmem:[%s238 + $0x80] sm:$0xff] %v271
                %v273 = vld [vmem:[%s237 + $0x108] sm:$0xff]
                %274 = vst [vmem:[%s238 + $0x88] sm:$0xff] %v273
                %v275 = vld [vmem:[%s237 + $0x110] sm:$0xff]
                %276 = vst [vmem:[%s238 + $0x90] sm:$0xff] %v275
                %v277 = vld [vmem:[%s237 + $0x118] sm:$0xff]
                %278 = vst [vmem:[%s238 + $0x98] sm:$0xff] %v277
                %v279 = vld [vmem:[%s237 + $0x120] sm:$0xff]
                %280 = vst [vmem:[%s238 + $0xa0] sm:$0xff] %v279
                %v281 = vld [vmem:[%s237 + $0x128] sm:$0xff]
                %282 = vst [vmem:[%s238 + $0xa8] sm:$0xff] %v281
                %v283 = vld [vmem:[%s237 + $0x130] sm:$0xff]
                %284 = vst [vmem:[%s238 + $0xb0] sm:$0xff] %v283
                %v285 = vld [vmem:[%s237 + $0x138] sm:$0xff]
                %286 = vst [vmem:[%s238 + $0xb8] sm:$0xff] %v285
                %v287 = vld [vmem:[%s237 + $0x180] sm:$0xff]
                %288 = vst [vmem:[%s238 + $0xc0] sm:$0xff] %v287
                %v289 = vld [vmem:[%s237 + $0x188] sm:$0xff]
                %290 = vst [vmem:[%s238 + $0xc8] sm:$0xff] %v289
                %v291 = vld [vmem:[%s237 + $0x190] sm:$0xff]
                %292 = vst [vmem:[%s238 + $0xd0] sm:$0xff] %v291
                %v293 = vld [vmem:[%s237 + $0x198] sm:$0xff]
                %294 = vst [vmem:[%s238 + $0xd8] sm:$0xff] %v293
                %v295 = vld [vmem:[%s237 + $0x1a0] sm:$0xff]
                %296 = vst [vmem:[%s238 + $0xe0] sm:$0xff] %v295
                %v297 = vld [vmem:[%s237 + $0x1a8] sm:$0xff]
                %298 = vst [vmem:[%s238 + $0xe8] sm:$0xff] %v297
                %v299 = vld [vmem:[%s237 + $0x1b0] sm:$0xff]
                %300 = vst [vmem:[%s238 + $0xf0] sm:$0xff] %v299
                %v301 = vld [vmem:[%s237 + $0x1b8] sm:$0xff]
                %302 = vst [vmem:[%s238 + $0xf8] sm:$0xff] %v301
              $region53: #{tpu_custom_call.1} parent=47 // loop_footer
                %s236 = sadd.s32 1, %s232
              $region54: #{tpu_custom_call.1} parent=47 // loop_footer_branch
                %231 = sbr.rel target = $region50
              $region55: #{tpu_custom_call.1} parent=47 // loop_exit
                _
            $region48: #{tpu_custom_call.1} parent=43 // pred_fallthru
              _
            // Predicated region
            $region56: #{tpu_custom_call.1} parent=43 // pred_check
              _
            $region57: #{tpu_custom_call.1} parent=43 // pred_check_branch
              %304 = sbr.rel target = $region59
            $region58: #{tpu_custom_call.1} parent=43 // pred_region
              _
            $region59: #{tpu_custom_call.1} parent=43 // pred_fallthru
              _
          $region44: #{tpu_custom_call.1} parent=39 // pred_fallthru
            _
          %305 = vnop
        $region40: #{tpu_custom_call.1} parent=31 // pred_fallthru
          _
      $region32: #{tpu_custom_call.1} parent=5 // pred_fallthru
        _
      %p306 = scmp.le.s32.totalorder 1, %s15
      %p307 = scmp.lt.s32.totalorder %s15, 3
      %p308 = pnand %p306, %p307
      %p309 = pneg %p308
      // Predicated region
      $region60: #{tpu_custom_call.1} parent=5 // pred_check
        _
      $region61: #{tpu_custom_call.1} parent=5 // pred_check_branch
        %311 = sbr.rel (%p308) target = $region63
      $region62: #{tpu_custom_call.1} parent=5 // pred_region
        %s312 = ssub.s32 %s15, 1
        %s313 = sand.u32 %s138, 1
        %s314 = sand.u32 %s138, 1
        %s315 = smul.addr %s314, 256
        %s316 = scalar_lea.vmem [#allocation3], %s315
        // Predicated region
        $region64: #{tpu_custom_call.1} parent=62 // pred_check
          %p317 = pneg %p151
        $region65: #{tpu_custom_call.1} parent=62 // pred_check_branch
          %319 = sbr.rel (%p317) target = $region67
        $region66: #{tpu_custom_call.1} parent=62 // pred_region
          _
        $region67: #{tpu_custom_call.1} parent=62 // pred_fallthru
          _
        %s320 = smul.u32 128, %s20
        %p321 = scmp.lt.s32.totalorder %s320, 255
        %s322 = scalar_select %p321, %s320, 255
        %s323 = smul.addr %s322, 4
        %s324 = scalar_lea.vmem %s0, %s323
        %p325 = pneg %p41
        %p326 = pneg %p38
        %p327 = pneg %p62
        %p328 = pneg %p59
        %p329 = pneg %p83
        %p330 = pneg %p80
        %p331 = pneg %p104
        %p332 = pneg %p101
        %p333 = pneg %p125
        %p334 = pneg %p122
        %s335 = sand.u32 %s138, 1
        %s336 = sand.u32 %s138, 1
        %s337 = smul.addr %s336, 256
        %s338 = scalar_lea.vmem [#allocation3], %s337
        %p339 = pneg %p151
        %p340 = pneg %p148
        %p341 = pneg %p177
        %p342 = pneg %p174
        %s343 = sand.u32 %s164, 1
        %s344 = scalar_lea.sflag [#allocation5], %s343
        %s345 = sand.u32 %s164, 1
        %s346 = smul.addr %s345, 192
        %s347 = scalar_lea.vmem [#allocation4], %s346
        %s348 = smul.u32 128, %s20
        %p349 = scmp.lt.s32.totalorder %s348, 255
        %s350 = scalar_select %p349, %s348, 255
        %s351 = smul.addr %s350, 4
        %s352 = scalar_lea.vmem %s0, %s351
        %s353 = smul.u32 128, %s20
        %s354 = smul.u32 8, %s20
        %s355 = smul.u32 8, %s20
        %v357 = vld [vmem:[%s1] sm:$0xf]
        %v358 = vld [vmem:[%s1 + $0x4] sm:$0xf]
        %v359 = vld [vmem:[%s1 + $0x8] sm:$0xf]
        %v360 = vld [vmem:[%s1 + $0xc] sm:$0xf]
        %v361 = vld [vmem:[%s1 + $0x10] sm:$0xf]
        %v362 = vld [vmem:[%s1 + $0x14] sm:$0xf]
        %v363 = vld [vmem:[%s1 + $0x18] sm:$0xf]
        %v364 = vld [vmem:[%s1 + $0x1c] sm:$0xf]
        %v365 = vld [vmem:[%s1 + $0x20] sm:$0xf]
        %v366 = vld [vmem:[%s1 + $0x24] sm:$0xf]
        %v367 = vld [vmem:[%s1 + $0x28] sm:$0xf]
        %v368 = vld [vmem:[%s1 + $0x2c] sm:$0xf]
        %v369 = vld [vmem:[%s352] sm:$0xf]
        %v370 = vld [vmem:[%s352 + $0x4] sm:$0xf]
        %v371 = vld [vmem:[%s352 + $0x8] sm:$0xf]
        %v372 = vld [vmem:[%s352 + $0xc] sm:$0xf]
        %v373 = vld [vmem:[%s352 + $0x10] sm:$0xf]
        %v374 = vld [vmem:[%s352 + $0x14] sm:$0xf]
        %v375 = vld [vmem:[%s352 + $0x18] sm:$0xf]
        %v376 = vld [vmem:[%s352 + $0x1c] sm:$0xf]
        %v377 = vld [vmem:[%s352 + $0x20] sm:$0xf]
        %v378 = vld [vmem:[%s352 + $0x24] sm:$0xf]
        %v379 = vld [vmem:[%s352 + $0x28] sm:$0xf]
        %v380 = vld [vmem:[%s352 + $0x2c] sm:$0xf]
        %v381 = vld [vmem:[%s352 + $0x30] sm:$0xf]
        %v382 = vld [vmem:[%s352 + $0x34] sm:$0xf]
        %v383 = vld [vmem:[%s352 + $0x38] sm:$0xf]
        %v384 = vld [vmem:[%s352 + $0x3c] sm:$0xf]
        %v385 = vld [vmem:[%s352 + $0x40] sm:$0xf]
        %v386 = vld [vmem:[%s352 + $0x44] sm:$0xf]
        %v387 = vld [vmem:[%s352 + $0x48] sm:$0xf]
        %v388 = vld [vmem:[%s352 + $0x4c] sm:$0xf]
        %v389 = vld [vmem:[%s352 + $0x50] sm:$0xf]
        %v390 = vld [vmem:[%s352 + $0x54] sm:$0xf]
        %v391 = vld [vmem:[%s352 + $0x58] sm:$0xf]
        %v392 = vld [vmem:[%s352 + $0x5c] sm:$0xf]
        %v393 = vld [vmem:[%s352 + $0x60] sm:$0xf]
        %v394 = vld [vmem:[%s352 + $0x64] sm:$0xf]
        %v395 = vld [vmem:[%s352 + $0x68] sm:$0xf]
        %v396 = vld [vmem:[%s352 + $0x6c] sm:$0xf]
        %v397 = vld [vmem:[%s352 + $0x70] sm:$0xf]
        %v398 = vld [vmem:[%s352 + $0x74] sm:$0xf]
        %v399 = vld [vmem:[%s352 + $0x78] sm:$0xf]
        %v400 = vld [vmem:[%s352 + $0x7c] sm:$0xf]
        %v401 = vld [vmem:[%s352 + $0x80] sm:$0xf]
        %v402 = vld [vmem:[%s352 + $0x84] sm:$0xf]
        %v403 = vld [vmem:[%s352 + $0x88] sm:$0xf]
        %v404 = vld [vmem:[%s352 + $0x8c] sm:$0xf]
        %v405 = vld [vmem:[%s352 + $0x90] sm:$0xf]
        %v406 = vld [vmem:[%s352 + $0x94] sm:$0xf]
        %v407 = vld [vmem:[%s352 + $0x98] sm:$0xf]
        %v408 = vld [vmem:[%s352 + $0x9c] sm:$0xf]
        %v409 = vld [vmem:[%s352 + $0xa0] sm:$0xf]
        %v410 = vld [vmem:[%s352 + $0xa4] sm:$0xf]
        %v411 = vld [vmem:[%s352 + $0xa8] sm:$0xf]
        %v412 = vld [vmem:[%s352 + $0xac] sm:$0xf]
        %v413 = vld [vmem:[%s352 + $0xb0] sm:$0xf]
        %v414 = vld [vmem:[%s352 + $0xb4] sm:$0xf]
        %v415 = vld [vmem:[%s352 + $0xb8] sm:$0xf]
        %v416 = vld [vmem:[%s352 + $0xbc] sm:$0xf]
        %v417 = vld [vmem:[%s352 + $0xc0] sm:$0xf]
        %v418 = vld [vmem:[%s352 + $0xc4] sm:$0xf]
        %v419 = vld [vmem:[%s352 + $0xc8] sm:$0xf]
        %v420 = vld [vmem:[%s352 + $0xcc] sm:$0xf]
        %v421 = vld [vmem:[%s352 + $0xd0] sm:$0xf]
        %v422 = vld [vmem:[%s352 + $0xd4] sm:$0xf]
        %v423 = vld [vmem:[%s352 + $0xd8] sm:$0xf]
        %v424 = vld [vmem:[%s352 + $0xdc] sm:$0xf]
        %v425 = vld [vmem:[%s352 + $0xe0] sm:$0xf]
        %v426 = vld [vmem:[%s352 + $0xe4] sm:$0xf]
        %v427 = vld [vmem:[%s352 + $0xe8] sm:$0xf]
        %v428 = vld [vmem:[%s352 + $0xec] sm:$0xf]
        %v429 = vld [vmem:[%s352 + $0xf0] sm:$0xf]
        %v430 = vld [vmem:[%s352 + $0xf4] sm:$0xf]
        %v431 = vld [vmem:[%s352 + $0xf8] sm:$0xf]
        %v432 = vld [vmem:[%s352 + $0xfc] sm:$0xf]
        %v433 = vld [vmem:[%s352 + $0x100] sm:$0xf]
        %v434 = vld [vmem:[%s352 + $0x104] sm:$0xf]
        %v435 = vld [vmem:[%s352 + $0x108] sm:$0xf]
        %v436 = vld [vmem:[%s352 + $0x10c] sm:$0xf]
        %v437 = vld [vmem:[%s352 + $0x110] sm:$0xf]
        %v438 = vld [vmem:[%s352 + $0x114] sm:$0xf]
        %v439 = vld [vmem:[%s352 + $0x118] sm:$0xf]
        %v440 = vld [vmem:[%s352 + $0x11c] sm:$0xf]
        %v441 = vld [vmem:[%s352 + $0x120] sm:$0xf]
        %v442 = vld [vmem:[%s352 + $0x124] sm:$0xf]
        %v443 = vld [vmem:[%s352 + $0x128] sm:$0xf]
        %v444 = vld [vmem:[%s352 + $0x12c] sm:$0xf]
        %v445 = vld [vmem:[%s352 + $0x130] sm:$0xf]
        %v446 = vld [vmem:[%s352 + $0x134] sm:$0xf]
        %v447 = vld [vmem:[%s352 + $0x138] sm:$0xf]
        %v448 = vld [vmem:[%s352 + $0x13c] sm:$0xf]
        %v449 = vld [vmem:[%s352 + $0x140] sm:$0xf]
        %v450 = vld [vmem:[%s352 + $0x144] sm:$0xf]
        %v451 = vld [vmem:[%s352 + $0x148] sm:$0xf]
        %v452 = vld [vmem:[%s352 + $0x14c] sm:$0xf]
        %v453 = vld [vmem:[%s352 + $0x150] sm:$0xf]
        %v454 = vld [vmem:[%s352 + $0x154] sm:$0xf]
        %v455 = vld [vmem:[%s352 + $0x158] sm:$0xf]
        %v456 = vld [vmem:[%s352 + $0x15c] sm:$0xf]
        %v457 = vld [vmem:[%s352 + $0x160] sm:$0xf]
        %v458 = vld [vmem:[%s352 + $0x164] sm:$0xf]
        %v459 = vld [vmem:[%s352 + $0x168] sm:$0xf]
        %v460 = vld [vmem:[%s352 + $0x16c] sm:$0xf]
        %v461 = vld [vmem:[%s352 + $0x170] sm:$0xf]
        %v462 = vld [vmem:[%s352 + $0x174] sm:$0xf]
        %v463 = vld [vmem:[%s352 + $0x178] sm:$0xf]
        %v464 = vld [vmem:[%s352 + $0x17c] sm:$0xf]
        %v465 = vld [vmem:[%s352 + $0x180] sm:$0xf]
        %v466 = vld [vmem:[%s352 + $0x184] sm:$0xf]
        %v467 = vld [vmem:[%s352 + $0x188] sm:$0xf]
        %v468 = vld [vmem:[%s352 + $0x18c] sm:$0xf]
        %v469 = vld [vmem:[%s352 + $0x190] sm:$0xf]
        %v470 = vld [vmem:[%s352 + $0x194] sm:$0xf]
        %v471 = vld [vmem:[%s352 + $0x198] sm:$0xf]
        %v472 = vld [vmem:[%s352 + $0x19c] sm:$0xf]
        %v473 = vld [vmem:[%s352 + $0x1a0] sm:$0xf]
        %v474 = vld [vmem:[%s352 + $0x1a4] sm:$0xf]
        %v475 = vld [vmem:[%s352 + $0x1a8] sm:$0xf]
        %v476 = vld [vmem:[%s352 + $0x1ac] sm:$0xf]
        %v477 = vld [vmem:[%s352 + $0x1b0] sm:$0xf]
        %v478 = vld [vmem:[%s352 + $0x1b4] sm:$0xf]
        %v479 = vld [vmem:[%s352 + $0x1b8] sm:$0xf]
        %v480 = vld [vmem:[%s352 + $0x1bc] sm:$0xf]
        %v481 = vld [vmem:[%s352 + $0x1c0] sm:$0xf]
        %v482 = vld [vmem:[%s352 + $0x1c4] sm:$0xf]
        %v483 = vld [vmem:[%s352 + $0x1c8] sm:$0xf]
        %v484 = vld [vmem:[%s352 + $0x1cc] sm:$0xf]
        %v485 = vld [vmem:[%s352 + $0x1d0] sm:$0xf]
        %v486 = vld [vmem:[%s352 + $0x1d4] sm:$0xf]
        %v487 = vld [vmem:[%s352 + $0x1d8] sm:$0xf]
        %v488 = vld [vmem:[%s352 + $0x1dc] sm:$0xf]
        %v489 = vld [vmem:[%s352 + $0x1e0] sm:$0xf]
        %v490 = vld [vmem:[%s352 + $0x1e4] sm:$0xf]
        %v491 = vld [vmem:[%s352 + $0x1e8] sm:$0xf]
        %v492 = vld [vmem:[%s352 + $0x1ec] sm:$0xf]
        %v493 = vld [vmem:[%s352 + $0x1f0] sm:$0xf]
        %v494 = vld [vmem:[%s352 + $0x1f4] sm:$0xf]
        %v495 = vld [vmem:[%s352 + $0x1f8] sm:$0xf]
        %v496 = vld [vmem:[%s352 + $0x1fc] sm:$0xf]
        %v497 = vld [vmem:[%s2] sm:$0xff]
        %v498 = vld [vmem:[%s2 + $0x8] sm:$0xff]
        %v499 = vld [vmem:[%s2 + $0x10] sm:$0xff]
        %v500 = vld [vmem:[%s2 + $0x18] sm:$0xff]
        %v501 = vld [vmem:[%s2 + $0x20] sm:$0xff]
        %v502 = vld [vmem:[%s2 + $0x28] sm:$0xff]
        %v503 = vld [vmem:[%s2 + $0x30] sm:$0xff]
        %v504 = vld [vmem:[%s2 + $0x38] sm:$0xff]
        %v505 = vld [vmem:[%s2 + $0x40] sm:$0xff]
        %v506 = vld [vmem:[%s2 + $0x48] sm:$0xff]
        %v507 = vld [vmem:[%s2 + $0x50] sm:$0xff]
        %v508 = vld [vmem:[%s2 + $0x58] sm:$0xff]
        %510 = vset.pattern.permute.xlu0 0
        %511 = vperm.xlu0 %510, %v497
        %v512 = vpop.permute.xlu0 %511
        %515 = vset.pattern.permute.xlu0 0
        %516 = vperm.xlu0 %515, %v498
        %v517 = vpop.permute.xlu0 %516
        %520 = vset.pattern.permute.xlu0 0
        %521 = vperm.xlu0 %520, %v499
        %v522 = vpop.permute.xlu0 %521
        %525 = vset.pattern.permute.xlu0 0
        %526 = vperm.xlu0 %525, %v500
        %v527 = vpop.permute.xlu0 %526
        %530 = vset.pattern.permute.xlu0 0
        %531 = vperm.xlu0 %530, %v501
        %v532 = vpop.permute.xlu0 %531
        %535 = vset.pattern.permute.xlu0 0
        %536 = vperm.xlu0 %535, %v502
        %v537 = vpop.permute.xlu0 %536
        %540 = vset.pattern.permute.xlu0 0
        %541 = vperm.xlu0 %540, %v503
        %v542 = vpop.permute.xlu0 %541
        %545 = vset.pattern.permute.xlu0 0
        %546 = vperm.xlu0 %545, %v504
        %v547 = vpop.permute.xlu0 %546
        %550 = vset.pattern.permute.xlu0 0
        %551 = vperm.xlu0 %550, %v505
        %v552 = vpop.permute.xlu0 %551
        %555 = vset.pattern.permute.xlu0 0
        %556 = vperm.xlu0 %555, %v506
        %v557 = vpop.permute.xlu0 %556
        %560 = vset.pattern.permute.xlu0 0
        %561 = vperm.xlu0 %560, %v507
        %v562 = vpop.permute.xlu0 %561
        %565 = vset.pattern.permute.xlu0 0
        %566 = vperm.xlu0 %565, %v508
        %v567 = vpop.permute.xlu0 %566
        %v581 = vunpack.c.l.b16 %v357
        %v582 = vunpack.c.l.b16 %v358
        %v583 = vunpack.c.l.b16 %v359
        %v584 = vunpack.c.l.b16 %v360
        %v585 = vunpack.c.l.b16 %v361
        %v586 = vunpack.c.l.b16 %v362
        %v587 = vunpack.c.l.b16 %v363
        %v588 = vunpack.c.l.b16 %v364
        %v589 = vunpack.c.l.b16 %v365
        %v590 = vunpack.c.l.b16 %v366
        %v591 = vunpack.c.l.b16 %v367
        %v592 = vunpack.c.l.b16 %v368
        %v593 = vpack.c.b16 %v582, %v581
        %v594 = vpack.c.b16 %v584, %v583
        %v595 = vpack.c.b16 %v586, %v585
        %v596 = vpack.c.b16 %v588, %v587
        %v597 = vpack.c.b16 %v590, %v589
        %v598 = vpack.c.b16 %v592, %v591
        %v727 = vunpack.c.l.b16 %v369
        %v728 = vunpack.c.l.b16 %v370
        %v729 = vunpack.c.l.b16 %v371
        %v730 = vunpack.c.l.b16 %v372
        %v731 = vunpack.c.l.b16 %v373
        %v732 = vunpack.c.l.b16 %v374
        %v733 = vunpack.c.l.b16 %v375
        %v734 = vunpack.c.l.b16 %v376
        %v735 = vunpack.c.l.b16 %v377
        %v736 = vunpack.c.l.b16 %v378
        %v737 = vunpack.c.l.b16 %v379
        %v738 = vunpack.c.l.b16 %v380
        %v739 = vunpack.c.l.b16 %v381
        %v740 = vunpack.c.l.b16 %v382
        %v741 = vunpack.c.l.b16 %v383
        %v742 = vunpack.c.l.b16 %v384
        %v743 = vunpack.c.l.b16 %v385
        %v744 = vunpack.c.l.b16 %v386
        %v745 = vunpack.c.l.b16 %v387
        %v746 = vunpack.c.l.b16 %v388
        %v747 = vunpack.c.l.b16 %v389
        %v748 = vunpack.c.l.b16 %v390
        %v749 = vunpack.c.l.b16 %v391
        %v750 = vunpack.c.l.b16 %v392
        %v751 = vunpack.c.l.b16 %v393
        %v752 = vunpack.c.l.b16 %v394
        %v753 = vunpack.c.l.b16 %v395
        %v754 = vunpack.c.l.b16 %v396
        %v755 = vunpack.c.l.b16 %v397
        %v756 = vunpack.c.l.b16 %v398
        %v757 = vunpack.c.l.b16 %v399
        %v758 = vunpack.c.l.b16 %v400
        %v759 = vunpack.c.l.b16 %v401
        %v760 = vunpack.c.l.b16 %v402
        %v761 = vunpack.c.l.b16 %v403
        %v762 = vunpack.c.l.b16 %v404
        %v763 = vunpack.c.l.b16 %v405
        %v764 = vunpack.c.l.b16 %v406
        %v765 = vunpack.c.l.b16 %v407
        %v766 = vunpack.c.l.b16 %v408
        %v767 = vunpack.c.l.b16 %v409
        %v768 = vunpack.c.l.b16 %v410
        %v769 = vunpack.c.l.b16 %v411
        %v770 = vunpack.c.l.b16 %v412
        %v771 = vunpack.c.l.b16 %v413
        %v772 = vunpack.c.l.b16 %v414
        %v773 = vunpack.c.l.b16 %v415
        %v774 = vunpack.c.l.b16 %v416
        %v775 = vunpack.c.l.b16 %v417
        %v776 = vunpack.c.l.b16 %v418
        %v777 = vunpack.c.l.b16 %v419
        %v778 = vunpack.c.l.b16 %v420
        %v779 = vunpack.c.l.b16 %v421
        %v780 = vunpack.c.l.b16 %v422
        %v781 = vunpack.c.l.b16 %v423
        %v782 = vunpack.c.l.b16 %v424
        %v783 = vunpack.c.l.b16 %v425
        %v784 = vunpack.c.l.b16 %v426
        %v785 = vunpack.c.l.b16 %v427
        %v786 = vunpack.c.l.b16 %v428
        %v787 = vunpack.c.l.b16 %v429
        %v788 = vunpack.c.l.b16 %v430
        %v789 = vunpack.c.l.b16 %v431
        %v790 = vunpack.c.l.b16 %v432
        %v791 = vunpack.c.l.b16 %v433
        %v792 = vunpack.c.l.b16 %v434
        %v793 = vunpack.c.l.b16 %v435
        %v794 = vunpack.c.l.b16 %v436
        %v795 = vunpack.c.l.b16 %v437
        %v796 = vunpack.c.l.b16 %v438
        %v797 = vunpack.c.l.b16 %v439
        %v798 = vunpack.c.l.b16 %v440
        %v799 = vunpack.c.l.b16 %v441
        %v800 = vunpack.c.l.b16 %v442
        %v801 = vunpack.c.l.b16 %v443
        %v802 = vunpack.c.l.b16 %v444
        %v803 = vunpack.c.l.b16 %v445
        %v804 = vunpack.c.l.b16 %v446
        %v805 = vunpack.c.l.b16 %v447
        %v806 = vunpack.c.l.b16 %v448
        %v807 = vunpack.c.l.b16 %v449
        %v808 = vunpack.c.l.b16 %v450
        %v809 = vunpack.c.l.b16 %v451
        %v810 = vunpack.c.l.b16 %v452
        %v811 = vunpack.c.l.b16 %v453
        %v812 = vunpack.c.l.b16 %v454
        %v813 = vunpack.c.l.b16 %v455
        %v814 = vunpack.c.l.b16 %v456
        %v815 = vunpack.c.l.b16 %v457
        %v816 = vunpack.c.l.b16 %v458
        %v817 = vunpack.c.l.b16 %v459
        %v818 = vunpack.c.l.b16 %v460
        %v819 = vunpack.c.l.b16 %v461
        %v820 = vunpack.c.l.b16 %v462
        %v821 = vunpack.c.l.b16 %v463
        %v822 = vunpack.c.l.b16 %v464
        %v823 = vunpack.c.l.b16 %v465
        %v824 = vunpack.c.l.b16 %v466
        %v825 = vunpack.c.l.b16 %v467
        %v826 = vunpack.c.l.b16 %v468
        %v827 = vunpack.c.l.b16 %v469
        %v828 = vunpack.c.l.b16 %v470
        %v829 = vunpack.c.l.b16 %v471
        %v830 = vunpack.c.l.b16 %v472
        %v831 = vunpack.c.l.b16 %v473
        %v832 = vunpack.c.l.b16 %v474
        %v833 = vunpack.c.l.b16 %v475
        %v834 = vunpack.c.l.b16 %v476
        %v835 = vunpack.c.l.b16 %v477
        %v836 = vunpack.c.l.b16 %v478
        %v837 = vunpack.c.l.b16 %v479
        %v838 = vunpack.c.l.b16 %v480
        %v839 = vunpack.c.l.b16 %v481
        %v840 = vunpack.c.l.b16 %v482
        %v841 = vunpack.c.l.b16 %v483
        %v842 = vunpack.c.l.b16 %v484
        %v843 = vunpack.c.l.b16 %v485
        %v844 = vunpack.c.l.b16 %v486
        %v845 = vunpack.c.l.b16 %v487
        %v846 = vunpack.c.l.b16 %v488
        %v847 = vunpack.c.l.b16 %v489
        %v848 = vunpack.c.l.b16 %v490
        %v849 = vunpack.c.l.b16 %v491
        %v850 = vunpack.c.l.b16 %v492
        %v851 = vunpack.c.l.b16 %v493
        %v852 = vunpack.c.l.b16 %v494
        %v853 = vunpack.c.l.b16 %v495
        %v854 = vunpack.c.l.b16 %v496
        %v855 = vpack.c.b16 %v728, %v727
        %v856 = vpack.c.b16 %v730, %v729
        %v857 = vpack.c.b16 %v732, %v731
        %v858 = vpack.c.b16 %v734, %v733
        %v859 = vpack.c.b16 %v736, %v735
        %v860 = vpack.c.b16 %v738, %v737
        %v861 = vpack.c.b16 %v740, %v739
        %v862 = vpack.c.b16 %v742, %v741
        %v863 = vpack.c.b16 %v744, %v743
        %v864 = vpack.c.b16 %v746, %v745
        %v865 = vpack.c.b16 %v748, %v747
        %v866 = vpack.c.b16 %v750, %v749
        %v867 = vpack.c.b16 %v752, %v751
        %v868 = vpack.c.b16 %v754, %v753
        %v869 = vpack.c.b16 %v756, %v755
        %v870 = vpack.c.b16 %v758, %v757
        %v871 = vpack.c.b16 %v760, %v759
        %v872 = vpack.c.b16 %v762, %v761
        %v873 = vpack.c.b16 %v764, %v763
        %v874 = vpack.c.b16 %v766, %v765
        %v875 = vpack.c.b16 %v768, %v767
        %v876 = vpack.c.b16 %v770, %v769
        %v877 = vpack.c.b16 %v772, %v771
        %v878 = vpack.c.b16 %v774, %v773
        %v879 = vpack.c.b16 %v776, %v775
        %v880 = vpack.c.b16 %v778, %v777
        %v881 = vpack.c.b16 %v780, %v779
        %v882 = vpack.c.b16 %v782, %v781
        %v883 = vpack.c.b16 %v784, %v783
        %v884 = vpack.c.b16 %v786, %v785
        %v885 = vpack.c.b16 %v788, %v787
        %v886 = vpack.c.b16 %v790, %v789
        %v887 = vpack.c.b16 %v792, %v791
        %v888 = vpack.c.b16 %v794, %v793
        %v889 = vpack.c.b16 %v796, %v795
        %v890 = vpack.c.b16 %v798, %v797
        %v891 = vpack.c.b16 %v800, %v799
        %v892 = vpack.c.b16 %v802, %v801
        %v893 = vpack.c.b16 %v804, %v803
        %v894 = vpack.c.b16 %v806, %v805
        %v895 = vpack.c.b16 %v808, %v807
        %v896 = vpack.c.b16 %v810, %v809
        %v897 = vpack.c.b16 %v812, %v811
        %v898 = vpack.c.b16 %v814, %v813
        %v899 = vpack.c.b16 %v816, %v815
        %v900 = vpack.c.b16 %v818, %v817
        %v901 = vpack.c.b16 %v820, %v819
        %v902 = vpack.c.b16 %v822, %v821
        %v903 = vpack.c.b16 %v824, %v823
        %v904 = vpack.c.b16 %v826, %v825
        %v905 = vpack.c.b16 %v828, %v827
        %v906 = vpack.c.b16 %v830, %v829
        %v907 = vpack.c.b16 %v832, %v831
        %v908 = vpack.c.b16 %v834, %v833
        %v909 = vpack.c.b16 %v836, %v835
        %v910 = vpack.c.b16 %v838, %v837
        %v911 = vpack.c.b16 %v840, %v839
        %v912 = vpack.c.b16 %v842, %v841
        %v913 = vpack.c.b16 %v844, %v843
        %v914 = vpack.c.b16 %v846, %v845
        %v915 = vpack.c.b16 %v848, %v847
        %v916 = vpack.c.b16 %v850, %v849
        %v917 = vpack.c.b16 %v852, %v851
        %v918 = vpack.c.b16 %v854, %v853
        %vm919 = vcmask 523264
        %v921 = vsel %vm919, %v593, 0
        %v924 = vsel %vm919, %v594, 0
        %v927 = vsel %vm919, %v595, 0
        %v930 = vsel %vm919, %v596, 0
        %v933 = vsel %vm919, %v597, 0
        %v936 = vsel %vm919, %v598, 0
        %v939 = vsel %vm919, %v855, 0
        %v942 = vsel %vm919, %v856, 0
        %v945 = vsel %vm919, %v857, 0
        %v948 = vsel %vm919, %v858, 0
        %v951 = vsel %vm919, %v859, 0
        %v954 = vsel %vm919, %v860, 0
        %v957 = vsel %vm919, %v861, 0
        %v960 = vsel %vm919, %v862, 0
        %v963 = vsel %vm919, %v863, 0
        %v966 = vsel %vm919, %v864, 0
        %v969 = vsel %vm919, %v865, 0
        %v972 = vsel %vm919, %v866, 0
        %v975 = vsel %vm919, %v867, 0
        %v978 = vsel %vm919, %v868, 0
        %v981 = vsel %vm919, %v869, 0
        %v984 = vsel %vm919, %v870, 0
        %v987 = vsel %vm919, %v871, 0
        %v990 = vsel %vm919, %v872, 0
        %v993 = vsel %vm919, %v873, 0
        %v996 = vsel %vm919, %v874, 0
        %v999 = vsel %vm919, %v875, 0
        %v1002 = vsel %vm919, %v876, 0
        %v1005 = vsel %vm919, %v877, 0
        %v1008 = vsel %vm919, %v878, 0
        %v1011 = vsel %vm919, %v879, 0
        %v1014 = vsel %vm919, %v880, 0
        %v1017 = vsel %vm919, %v881, 0
        %v1020 = vsel %vm919, %v882, 0
        %v1023 = vsel %vm919, %v883, 0
        %v1026 = vsel %vm919, %v884, 0
        %v1029 = vsel %vm919, %v885, 0
        %v1032 = vsel %vm919, %v886, 0
        %v1035 = vsel %vm919, %v887, 0
        %v1038 = vsel %vm919, %v888, 0
        %v1041 = vsel %vm919, %v889, 0
        %v1044 = vsel %vm919, %v890, 0
        %v1047 = vsel %vm919, %v891, 0
        %v1050 = vsel %vm919, %v892, 0
        %v1053 = vsel %vm919, %v893, 0
        %v1056 = vsel %vm919, %v894, 0
        %v1059 = vsel %vm919, %v895, 0
        %v1062 = vsel %vm919, %v896, 0
        %v1065 = vsel %vm919, %v897, 0
        %v1068 = vsel %vm919, %v898, 0
        %v1071 = vsel %vm919, %v899, 0
        %v1074 = vsel %vm919, %v900, 0
        %v1077 = vsel %vm919, %v901, 0
        %v1080 = vsel %vm919, %v902, 0
        %v1083 = vsel %vm919, %v903, 0
        %v1086 = vsel %vm919, %v904, 0
        %v1089 = vsel %vm919, %v905, 0
        %v1092 = vsel %vm919, %v906, 0
        %v1095 = vsel %vm919, %v907, 0
        %v1098 = vsel %vm919, %v908, 0
        %v1101 = vsel %vm919, %v909, 0
        %v1104 = vsel %vm919, %v910, 0
        %v1107 = vsel %vm919, %v911, 0
        %v1110 = vsel %vm919, %v912, 0
        %v1113 = vsel %vm919, %v913, 0
        %v1116 = vsel %vm919, %v914, 0
        %v1119 = vsel %vm919, %v915, 0
        %v1122 = vsel %vm919, %v916, 0
        %v1125 = vsel %vm919, %v917, 0
        %v1128 = vsel %vm919, %v918, 0
        %1130 = vmatprep.subr.bf16.mxu0 0
        %1131 = vmatpush1.bf16.xpose.msra.mxu0 %v960
        %1132 = vmatprep.subr.bf16.mxu0 0
        %1133 = vmatpush1.bf16.xpose.msra.mxu0 %v957
        %1134 = vmatprep.subr.bf16.mxu0 0
        %1135 = vmatpush1.bf16.xpose.msra.mxu0 %v954
        %1136 = vmatprep.subr.bf16.mxu0 0
        %1137 = vmatpush1.bf16.xpose.msra.mxu0 %v951
        %1138 = vmatprep.subr.bf16.mxu0 0
        %1139 = vmatpush1.bf16.xpose.msra.mxu0 %v948
        %1140 = vmatprep.subr.bf16.mxu0 0
        %1141 = vmatpush1.bf16.xpose.msra.mxu0 %v945
        %1142 = vmatprep.subr.bf16.mxu0 0
        %1143 = vmatpush1.bf16.xpose.msra.mxu0 %v942
        %1144 = vmatprep.subr.bf16.mxu0 0
        %1145 = vmatpush1.bf16.xpose.msra.mxu0 %v939
        %1146 = vmatprep.subr.bf16.mxu0 0
        %1147 = vmatpush2.bf16.xpose.msra.mxu0 %v984
        %1148 = vmatprep.subr.bf16.mxu0 0
        %1149 = vmatpush2.bf16.xpose.msra.mxu0 %v981
        %1150 = vmatprep.subr.bf16.mxu0 0
        %1151 = vmatpush2.bf16.xpose.msra.mxu0 %v978
        %1152 = vmatprep.subr.bf16.mxu0 0
        %1153 = vmatpush2.bf16.xpose.msra.mxu0 %v975
        %1154 = vmatprep.subr.bf16.mxu0 0
        %1155 = vmatpush2.bf16.xpose.msra.mxu0 %v972
        %1156 = vmatprep.subr.bf16.mxu0 0
        %1157 = vmatpush2.bf16.xpose.msra.mxu0 %v969
        %1158 = vmatprep.subr.bf16.mxu0 0
        %1159 = vmatpush2.bf16.xpose.msra.mxu0 %v966
        %1160 = vmatprep.subr.bf16.mxu0 0
        %1161 = vmatpush2.bf16.xpose.msra.mxu0 %v963
        %1162 = vmatprep.mubr.bf16.mxu0 0
        %1163 = vmatmul.mubr.bf16.gmra.mxu0 %v921
        %v1164 = vpop.f32.mrf.mxu0
        %v1165 = vadd.f32 %v512, %v1164
        %v1166 = vpop.f32.mrf.mxu0
        %v1167 = vadd.f32 %v512, %v1166
        %v1168 = vpop.f32.mrf.mxu0
        %v1169 = vadd.f32 %v517, %v1168
        %v1170 = vpop.f32.mrf.mxu0
        %v1171 = vadd.f32 %v517, %v1170
        %1172 = vmatprep.mubr.bf16.mxu0 0
        %1173 = vmatmul.mubr.bf16.gmra.mxu0 %v924
        %v1174 = vpop.f32.mrf.mxu0
        %v1175 = vadd.f32 %v522, %v1174
        %v1176 = vpop.f32.mrf.mxu0
        %v1177 = vadd.f32 %v522, %v1176
        %v1178 = vpop.f32.mrf.mxu0
        %v1179 = vadd.f32 %v527, %v1178
        %v1180 = vpop.f32.mrf.mxu0
        %v1181 = vadd.f32 %v527, %v1180
        %1182 = vmatprep.mubr.bf16.mxu0 0
        %1183 = vmatmul.mubr.bf16.gmra.mxu0 %v927
        %v1184 = vpop.f32.mrf.mxu0
        %v1185 = vadd.f32 %v532, %v1184
        %v1186 = vpop.f32.mrf.mxu0
        %v1187 = vadd.f32 %v532, %v1186
        %v1188 = vpop.f32.mrf.mxu0
        %v1189 = vadd.f32 %v537, %v1188
        %v1190 = vpop.f32.mrf.mxu0
        %v1191 = vadd.f32 %v537, %v1190
        %1192 = vmatprep.mubr.bf16.mxu0 0
        %1193 = vmatmul.mubr.bf16.gmra.mxu0 %v930
        %v1194 = vpop.f32.mrf.mxu0
        %v1195 = vadd.f32 %v542, %v1194
        %v1196 = vpop.f32.mrf.mxu0
        %v1197 = vadd.f32 %v542, %v1196
        %v1198 = vpop.f32.mrf.mxu0
        %v1199 = vadd.f32 %v547, %v1198
        %v1200 = vpop.f32.mrf.mxu0
        %v1201 = vadd.f32 %v547, %v1200
        %1202 = vmatprep.mubr.bf16.mxu0 0
        %1203 = vmatmul.mubr.bf16.gmra.mxu0 %v933
        %v1204 = vpop.f32.mrf.mxu0
        %v1205 = vadd.f32 %v552, %v1204
        %v1206 = vpop.f32.mrf.mxu0
        %v1207 = vadd.f32 %v552, %v1206
        %v1208 = vpop.f32.mrf.mxu0
        %v1209 = vadd.f32 %v557, %v1208
        %v1210 = vpop.f32.mrf.mxu0
        %v1211 = vadd.f32 %v557, %v1210
        %1212 = vmatprep.mubr.bf16.mxu0 0
        %1213 = vmatmul.mubr.bf16.gmra.mxu0 %v936
        %v1214 = vpop.f32.mrf.mxu0
        %v1215 = vadd.f32 %v562, %v1214
        %v1216 = vpop.f32.mrf.mxu0
        %v1217 = vadd.f32 %v562, %v1216
        %v1218 = vpop.f32.mrf.mxu0
        %v1219 = vadd.f32 %v567, %v1218
        %v1220 = vpop.f32.mrf.mxu0
        %v1221 = vadd.f32 %v567, %v1220
        %1222 = vdwg.mxu0
        %1223 = vmatprep.subr.bf16.mxu0 0
        %1224 = vmatpush1.bf16.xpose.msra.mxu0 %v1008
        %1225 = vmatprep.subr.bf16.mxu0 0
        %1226 = vmatpush1.bf16.xpose.msra.mxu0 %v1005
        %1227 = vmatprep.subr.bf16.mxu0 0
        %1228 = vmatpush1.bf16.xpose.msra.mxu0 %v1002
        %1229 = vmatprep.subr.bf16.mxu0 0
        %1230 = vmatpush1.bf16.xpose.msra.mxu0 %v999
        %1231 = vmatprep.subr.bf16.mxu0 0
        %1232 = vmatpush1.bf16.xpose.msra.mxu0 %v996
        %1233 = vmatprep.subr.bf16.mxu0 0
        %1234 = vmatpush1.bf16.xpose.msra.mxu0 %v993
        %1235 = vmatprep.subr.bf16.mxu0 0
        %1236 = vmatpush1.bf16.xpose.msra.mxu0 %v990
        %1237 = vmatprep.subr.bf16.mxu0 0
        %1238 = vmatpush1.bf16.xpose.msra.mxu0 %v987
        %1239 = vmatprep.subr.bf16.mxu0 0
        %1240 = vmatpush2.bf16.xpose.msra.mxu0 %v1032
        %1241 = vmatprep.subr.bf16.mxu0 0
        %1242 = vmatpush2.bf16.xpose.msra.mxu0 %v1029
        %1243 = vmatprep.subr.bf16.mxu0 0
        %1244 = vmatpush2.bf16.xpose.msra.mxu0 %v1026
        %1245 = vmatprep.subr.bf16.mxu0 0
        %1246 = vmatpush2.bf16.xpose.msra.mxu0 %v1023
        %1247 = vmatprep.subr.bf16.mxu0 0
        %1248 = vmatpush2.bf16.xpose.msra.mxu0 %v1020
        %1249 = vmatprep.subr.bf16.mxu0 0
        %1250 = vmatpush2.bf16.xpose.msra.mxu0 %v1017
        %1251 = vmatprep.subr.bf16.mxu0 0
        %1252 = vmatpush2.bf16.xpose.msra.mxu0 %v1014
        %1253 = vmatprep.subr.bf16.mxu0 0
        %1254 = vmatpush2.bf16.xpose.msra.mxu0 %v1011
        %1255 = vmatprep.mubr.bf16.mxu0 0
        %1256 = vmatmul.mubr.bf16.gmra.mxu0 %v921
        %v1257 = vpop.f32.mrf.mxu0
        %v1258 = vadd.f32 %v512, %v1257
        %v1259 = vpop.f32.mrf.mxu0
        %v1260 = vadd.f32 %v512, %v1259
        %v1261 = vpop.f32.mrf.mxu0
        %v1262 = vadd.f32 %v517, %v1261
        %v1263 = vpop.f32.mrf.mxu0
        %v1264 = vadd.f32 %v517, %v1263
        %1265 = vmatprep.mubr.bf16.mxu0 0
        %1266 = vmatmul.mubr.bf16.gmra.mxu0 %v924
        %v1267 = vpop.f32.mrf.mxu0
        %v1268 = vadd.f32 %v522, %v1267
        %v1269 = vpop.f32.mrf.mxu0
        %v1270 = vadd.f32 %v522, %v1269
        %v1271 = vpop.f32.mrf.mxu0
        %v1272 = vadd.f32 %v527, %v1271
        %v1273 = vpop.f32.mrf.mxu0
        %v1274 = vadd.f32 %v527, %v1273
        %1275 = vmatprep.mubr.bf16.mxu0 0
        %1276 = vmatmul.mubr.bf16.gmra.mxu0 %v927
        %v1277 = vpop.f32.mrf.mxu0
        %v1278 = vadd.f32 %v532, %v1277
        %v1279 = vpop.f32.mrf.mxu0
        %v1280 = vadd.f32 %v532, %v1279
        %v1281 = vpop.f32.mrf.mxu0
        %v1282 = vadd.f32 %v537, %v1281
        %v1283 = vpop.f32.mrf.mxu0
        %v1284 = vadd.f32 %v537, %v1283
        %1285 = vmatprep.mubr.bf16.mxu0 0
        %1286 = vmatmul.mubr.bf16.gmra.mxu0 %v930
        %v1287 = vpop.f32.mrf.mxu0
        %v1288 = vadd.f32 %v542, %v1287
        %v1289 = vpop.f32.mrf.mxu0
        %v1290 = vadd.f32 %v542, %v1289
        %v1291 = vpop.f32.mrf.mxu0
        %v1292 = vadd.f32 %v547, %v1291
        %v1293 = vpop.f32.mrf.mxu0
        %v1294 = vadd.f32 %v547, %v1293
        %1295 = vmatprep.mubr.bf16.mxu0 0
        %1296 = vmatmul.mubr.bf16.gmra.mxu0 %v933
        %v1297 = vpop.f32.mrf.mxu0
        %v1298 = vadd.f32 %v552, %v1297
        %v1299 = vpop.f32.mrf.mxu0
        %v1300 = vadd.f32 %v552, %v1299
        %v1301 = vpop.f32.mrf.mxu0
        %v1302 = vadd.f32 %v557, %v1301
        %v1303 = vpop.f32.mrf.mxu0
        %v1304 = vadd.f32 %v557, %v1303
        %1305 = vmatprep.mubr.bf16.mxu0 0
        %1306 = vmatmul.mubr.bf16.gmra.mxu0 %v936
        %v1307 = vpop.f32.mrf.mxu0
        %v1308 = vadd.f32 %v562, %v1307
        %v1309 = vpop.f32.mrf.mxu0
        %v1310 = vadd.f32 %v562, %v1309
        %v1311 = vpop.f32.mrf.mxu0
        %v1312 = vadd.f32 %v567, %v1311
        %v1313 = vpop.f32.mrf.mxu0
        %v1314 = vadd.f32 %v567, %v1313
        %1315 = vdwg.mxu0
        %1316 = vmatprep.subr.bf16.mxu0 0
        %1317 = vmatpush1.bf16.xpose.msra.mxu0 %v1056
        %1318 = vmatprep.subr.bf16.mxu0 0
        %1319 = vmatpush1.bf16.xpose.msra.mxu0 %v1053
        %1320 = vmatprep.subr.bf16.mxu0 0
        %1321 = vmatpush1.bf16.xpose.msra.mxu0 %v1050
        %1322 = vmatprep.subr.bf16.mxu0 0
        %1323 = vmatpush1.bf16.xpose.msra.mxu0 %v1047
        %1324 = vmatprep.subr.bf16.mxu0 0
        %1325 = vmatpush1.bf16.xpose.msra.mxu0 %v1044
        %1326 = vmatprep.subr.bf16.mxu0 0
        %1327 = vmatpush1.bf16.xpose.msra.mxu0 %v1041
        %1328 = vmatprep.subr.bf16.mxu0 0
        %1329 = vmatpush1.bf16.xpose.msra.mxu0 %v1038
        %1330 = vmatprep.subr.bf16.mxu0 0
        %1331 = vmatpush1.bf16.xpose.msra.mxu0 %v1035
        %1332 = vmatprep.subr.bf16.mxu0 0
        %1333 = vmatpush2.bf16.xpose.msra.mxu0 %v1080
        %1334 = vmatprep.subr.bf16.mxu0 0
        %1335 = vmatpush2.bf16.xpose.msra.mxu0 %v1077
        %1336 = vmatprep.subr.bf16.mxu0 0
        %1337 = vmatpush2.bf16.xpose.msra.mxu0 %v1074
        %1338 = vmatprep.subr.bf16.mxu0 0
        %1339 = vmatpush2.bf16.xpose.msra.mxu0 %v1071
        %1340 = vmatprep.subr.bf16.mxu0 0
        %1341 = vmatpush2.bf16.xpose.msra.mxu0 %v1068
        %1342 = vmatprep.subr.bf16.mxu0 0
        %1343 = vmatpush2.bf16.xpose.msra.mxu0 %v1065
        %1344 = vmatprep.subr.bf16.mxu0 0
        %1345 = vmatpush2.bf16.xpose.msra.mxu0 %v1062
        %1346 = vmatprep.subr.bf16.mxu0 0
        %1347 = vmatpush2.bf16.xpose.msra.mxu0 %v1059
        %1348 = vmatprep.mubr.bf16.mxu0 0
        %1349 = vmatmul.mubr.bf16.gmra.mxu0 %v921
        %v1350 = vpop.f32.mrf.mxu0
        %v1351 = vadd.f32 %v512, %v1350
        %v1352 = vpop.f32.mrf.mxu0
        %v1353 = vadd.f32 %v512, %v1352
        %v1354 = vpop.f32.mrf.mxu0
        %v1355 = vadd.f32 %v517, %v1354
        %v1356 = vpop.f32.mrf.mxu0
        %v1357 = vadd.f32 %v517, %v1356
        %1358 = vmatprep.mubr.bf16.mxu0 0
        %1359 = vmatmul.mubr.bf16.gmra.mxu0 %v924
        %v1360 = vpop.f32.mrf.mxu0
        %v1361 = vadd.f32 %v522, %v1360
        %v1362 = vpop.f32.mrf.mxu0
        %v1363 = vadd.f32 %v522, %v1362
        %v1364 = vpop.f32.mrf.mxu0
        %v1365 = vadd.f32 %v527, %v1364
        %v1366 = vpop.f32.mrf.mxu0
        %v1367 = vadd.f32 %v527, %v1366
        %1368 = vmatprep.mubr.bf16.mxu0 0
        %1369 = vmatmul.mubr.bf16.gmra.mxu0 %v927
        %v1370 = vpop.f32.mrf.mxu0
        %v1371 = vadd.f32 %v532, %v1370
        %v1372 = vpop.f32.mrf.mxu0
        %v1373 = vadd.f32 %v532, %v1372
        %v1374 = vpop.f32.mrf.mxu0
        %v1375 = vadd.f32 %v537, %v1374
        %v1376 = vpop.f32.mrf.mxu0
        %v1377 = vadd.f32 %v537, %v1376
        %1378 = vmatprep.mubr.bf16.mxu0 0
        %1379 = vmatmul.mubr.bf16.gmra.mxu0 %v930
        %v1380 = vpop.f32.mrf.mxu0
        %v1381 = vadd.f32 %v542, %v1380
        %v1382 = vpop.f32.mrf.mxu0
        %v1383 = vadd.f32 %v542, %v1382
        %v1384 = vpop.f32.mrf.mxu0
        %v1385 = vadd.f32 %v547, %v1384
        %v1386 = vpop.f32.mrf.mxu0
        %v1387 = vadd.f32 %v547, %v1386
        %1388 = vmatprep.mubr.bf16.mxu0 0
        %1389 = vmatmul.mubr.bf16.gmra.mxu0 %v933
        %v1390 = vpop.f32.mrf.mxu0
        %v1391 = vadd.f32 %v552, %v1390
        %v1392 = vpop.f32.mrf.mxu0
        %v1393 = vadd.f32 %v552, %v1392
        %v1394 = vpop.f32.mrf.mxu0
        %v1395 = vadd.f32 %v557, %v1394
        %v1396 = vpop.f32.mrf.mxu0
        %v1397 = vadd.f32 %v557, %v1396
        %1398 = vmatprep.mubr.bf16.mxu0 0
        %1399 = vmatmul.mubr.bf16.gmra.mxu0 %v936
        %v1400 = vpop.f32.mrf.mxu0
        %v1401 = vadd.f32 %v562, %v1400
        %v1402 = vpop.f32.mrf.mxu0
        %v1403 = vadd.f32 %v562, %v1402
        %v1404 = vpop.f32.mrf.mxu0
        %v1405 = vadd.f32 %v567, %v1404
        %v1406 = vpop.f32.mrf.mxu0
        %v1407 = vadd.f32 %v567, %v1406
        %1408 = vdwg.mxu0
        %1409 = vmatprep.subr.bf16.mxu0 0
        %1410 = vmatpush1.bf16.xpose.msra.mxu0 %v1104
        %1411 = vmatprep.subr.bf16.mxu0 0
        %1412 = vmatpush1.bf16.xpose.msra.mxu0 %v1101
        %1413 = vmatprep.subr.bf16.mxu0 0
        %1414 = vmatpush1.bf16.xpose.msra.mxu0 %v1098
        %1415 = vmatprep.subr.bf16.mxu0 0
        %1416 = vmatpush1.bf16.xpose.msra.mxu0 %v1095
        %1417 = vmatprep.subr.bf16.mxu0 0
        %1418 = vmatpush1.bf16.xpose.msra.mxu0 %v1092
        %1419 = vmatprep.subr.bf16.mxu0 0
        %1420 = vmatpush1.bf16.xpose.msra.mxu0 %v1089
        %1421 = vmatprep.subr.bf16.mxu0 0
        %1422 = vmatpush1.bf16.xpose.msra.mxu0 %v1086
        %1423 = vmatprep.subr.bf16.mxu0 0
        %1424 = vmatpush1.bf16.xpose.msra.mxu0 %v1083
        %1425 = vmatprep.subr.bf16.mxu0 0
        %1426 = vmatpush2.bf16.xpose.msra.mxu0 %v1128
        %1427 = vmatprep.subr.bf16.mxu0 0
        %1428 = vmatpush2.bf16.xpose.msra.mxu0 %v1125
        %1429 = vmatprep.subr.bf16.mxu0 0
        %1430 = vmatpush2.bf16.xpose.msra.mxu0 %v1122
        %1431 = vmatprep.subr.bf16.mxu0 0
        %1432 = vmatpush2.bf16.xpose.msra.mxu0 %v1119
        %1433 = vmatprep.subr.bf16.mxu0 0
        %1434 = vmatpush2.bf16.xpose.msra.mxu0 %v1116
        %1435 = vmatprep.subr.bf16.mxu0 0
        %1436 = vmatpush2.bf16.xpose.msra.mxu0 %v1113
        %1437 = vmatprep.subr.bf16.mxu0 0
        %1438 = vmatpush2.bf16.xpose.msra.mxu0 %v1110
        %1439 = vmatprep.subr.bf16.mxu0 0
        %1440 = vmatpush2.bf16.xpose.msra.mxu0 %v1107
        %1441 = vmatprep.mubr.bf16.mxu0 0
        %1442 = vmatmul.mubr.bf16.gmra.mxu0 %v921
        %v1443 = vpop.f32.mrf.mxu0
        %v1444 = vadd.f32 %v512, %v1443
        %v1445 = vpop.f32.mrf.mxu0
        %v1446 = vadd.f32 %v512, %v1445
        %v1447 = vpop.f32.mrf.mxu0
        %v1448 = vadd.f32 %v517, %v1447
        %v1449 = vpop.f32.mrf.mxu0
        %v1450 = vadd.f32 %v517, %v1449
        %1451 = vmatprep.mubr.bf16.mxu0 0
        %1452 = vmatmul.mubr.bf16.gmra.mxu0 %v924
        %v1453 = vpop.f32.mrf.mxu0
        %v1454 = vadd.f32 %v522, %v1453
        %v1455 = vpop.f32.mrf.mxu0
        %v1456 = vadd.f32 %v522, %v1455
        %v1457 = vpop.f32.mrf.mxu0
        %v1458 = vadd.f32 %v527, %v1457
        %v1459 = vpop.f32.mrf.mxu0
        %v1460 = vadd.f32 %v527, %v1459
        %1461 = vmatprep.mubr.bf16.mxu0 0
        %1462 = vmatmul.mubr.bf16.gmra.mxu0 %v927
        %v1463 = vpop.f32.mrf.mxu0
        %v1464 = vadd.f32 %v532, %v1463
        %v1465 = vpop.f32.mrf.mxu0
        %v1466 = vadd.f32 %v532, %v1465
        %v1467 = vpop.f32.mrf.mxu0
        %v1468 = vadd.f32 %v537, %v1467
        %v1469 = vpop.f32.mrf.mxu0
        %v1470 = vadd.f32 %v537, %v1469
        %1471 = vmatprep.mubr.bf16.mxu0 0
        %1472 = vmatmul.mubr.bf16.gmra.mxu0 %v930
        %v1473 = vpop.f32.mrf.mxu0
        %v1474 = vadd.f32 %v542, %v1473
        %v1475 = vpop.f32.mrf.mxu0
        %v1476 = vadd.f32 %v542, %v1475
        %v1477 = vpop.f32.mrf.mxu0
        %v1478 = vadd.f32 %v547, %v1477
        %v1479 = vpop.f32.mrf.mxu0
        %v1480 = vadd.f32 %v547, %v1479
        %1481 = vmatprep.mubr.bf16.mxu0 0
        %1482 = vmatmul.mubr.bf16.gmra.mxu0 %v933
        %v1483 = vpop.f32.mrf.mxu0
        %v1484 = vadd.f32 %v552, %v1483
        %v1485 = vpop.f32.mrf.mxu0
        %v1486 = vadd.f32 %v552, %v1485
        %v1487 = vpop.f32.mrf.mxu0
        %v1488 = vadd.f32 %v557, %v1487
        %v1489 = vpop.f32.mrf.mxu0
        %v1490 = vadd.f32 %v557, %v1489
        %1491 = vmatprep.mubr.bf16.mxu0 0
        %1492 = vmatmul.mubr.bf16.gmra.mxu0 %v936
        %v1493 = vpop.f32.mrf.mxu0
        %v1494 = vadd.f32 %v562, %v1493
        %v1495 = vpop.f32.mrf.mxu0
        %v1496 = vadd.f32 %v562, %v1495
        %v1497 = vpop.f32.mrf.mxu0
        %v1498 = vadd.f32 %v567, %v1497
        %v1499 = vpop.f32.mrf.mxu0
        %v1500 = vadd.f32 %v567, %v1499
        %1501 = vdwg.mxu0
        %v1502 = vmax.f32 %v1165, 0.0
        %v1503 = vmax.f32 %v1167, 0.0
        %v1504 = vmax.f32 %v1258, 0.0
        %v1505 = vmax.f32 %v1260, 0.0
        %v1506 = vmax.f32 %v1351, 0.0
        %v1507 = vmax.f32 %v1353, 0.0
        %v1508 = vmax.f32 %v1444, 0.0
        %v1509 = vmax.f32 %v1446, 0.0
        %v1510 = vmax.f32 %v1169, 0.0
        %v1511 = vmax.f32 %v1171, 0.0
        %v1512 = vmax.f32 %v1262, 0.0
        %v1513 = vmax.f32 %v1264, 0.0
        %v1514 = vmax.f32 %v1355, 0.0
        %v1515 = vmax.f32 %v1357, 0.0
        %v1516 = vmax.f32 %v1448, 0.0
        %v1517 = vmax.f32 %v1450, 0.0
        %v1518 = vmax.f32 %v1175, 0.0
        %v1519 = vmax.f32 %v1177, 0.0
        %v1520 = vmax.f32 %v1268, 0.0
        %v1521 = vmax.f32 %v1270, 0.0
        %v1522 = vmax.f32 %v1361, 0.0
        %v1523 = vmax.f32 %v1363, 0.0
        %v1524 = vmax.f32 %v1454, 0.0
        %v1525 = vmax.f32 %v1456, 0.0
        %v1526 = vmax.f32 %v1179, 0.0
        %v1527 = vmax.f32 %v1181, 0.0
        %v1528 = vmax.f32 %v1272, 0.0
        %v1529 = vmax.f32 %v1274, 0.0
        %v1530 = vmax.f32 %v1365, 0.0
        %v1531 = vmax.f32 %v1367, 0.0
        %v1532 = vmax.f32 %v1458, 0.0
        %v1533 = vmax.f32 %v1460, 0.0
        %v1534 = vmax.f32 %v1185, 0.0
        %v1535 = vmax.f32 %v1187, 0.0
        %v1536 = vmax.f32 %v1278, 0.0
        %v1537 = vmax.f32 %v1280, 0.0
        %v1538 = vmax.f32 %v1371, 0.0
        %v1539 = vmax.f32 %v1373, 0.0
        %v1540 = vmax.f32 %v1464, 0.0
        %v1541 = vmax.f32 %v1466, 0.0
        %v1542 = vmax.f32 %v1189, 0.0
        %v1543 = vmax.f32 %v1191, 0.0
        %v1544 = vmax.f32 %v1282, 0.0
        %v1545 = vmax.f32 %v1284, 0.0
        %v1546 = vmax.f32 %v1375, 0.0
        %v1547 = vmax.f32 %v1377, 0.0
        %v1548 = vmax.f32 %v1468, 0.0
        %v1549 = vmax.f32 %v1470, 0.0
        %v1550 = vmax.f32 %v1195, 0.0
        %v1551 = vmax.f32 %v1197, 0.0
        %v1552 = vmax.f32 %v1288, 0.0
        %v1553 = vmax.f32 %v1290, 0.0
        %v1554 = vmax.f32 %v1381, 0.0
        %v1555 = vmax.f32 %v1383, 0.0
        %v1556 = vmax.f32 %v1474, 0.0
        %v1557 = vmax.f32 %v1476, 0.0
        %v1558 = vmax.f32 %v1199, 0.0
        %v1559 = vmax.f32 %v1201, 0.0
        %v1560 = vmax.f32 %v1292, 0.0
        %v1561 = vmax.f32 %v1294, 0.0
        %v1562 = vmax.f32 %v1385, 0.0
        %v1563 = vmax.f32 %v1387, 0.0
        %v1564 = vmax.f32 %v1478, 0.0
        %v1565 = vmax.f32 %v1480, 0.0
        %v1566 = vmax.f32 %v1205, 0.0
        %v1567 = vmax.f32 %v1207, 0.0
        %v1568 = vmax.f32 %v1298, 0.0
        %v1569 = vmax.f32 %v1300, 0.0
        %v1570 = vmax.f32 %v1391, 0.0
        %v1571 = vmax.f32 %v1393, 0.0
        %v1572 = vmax.f32 %v1484, 0.0
        %v1573 = vmax.f32 %v1486, 0.0
        %v1574 = vmax.f32 %v1209, 0.0
        %v1575 = vmax.f32 %v1211, 0.0
        %v1576 = vmax.f32 %v1302, 0.0
        %v1577 = vmax.f32 %v1304, 0.0
        %v1578 = vmax.f32 %v1395, 0.0
        %v1579 = vmax.f32 %v1397, 0.0
        %v1580 = vmax.f32 %v1488, 0.0
        %v1581 = vmax.f32 %v1490, 0.0
        %v1582 = vmax.f32 %v1215, 0.0
        %v1583 = vmax.f32 %v1217, 0.0
        %v1584 = vmax.f32 %v1308, 0.0
        %v1585 = vmax.f32 %v1310, 0.0
        %v1586 = vmax.f32 %v1401, 0.0
        %v1587 = vmax.f32 %v1403, 0.0
        %v1588 = vmax.f32 %v1494, 0.0
        %v1589 = vmax.f32 %v1496, 0.0
        %v1590 = vmax.f32 %v1219, 0.0
        %v1591 = vmax.f32 %v1221, 0.0
        %v1592 = vmax.f32 %v1312, 0.0
        %v1593 = vmax.f32 %v1314, 0.0
        %v1594 = vmax.f32 %v1405, 0.0
        %v1595 = vmax.f32 %v1407, 0.0
        %v1596 = vmax.f32 %v1498, 0.0
        %v1597 = vmax.f32 %v1500, 0.0
        %v1598 = vld [vmem:[%s3] sm:$0xff]
        %v1599 = vld [vmem:[%s3 + $0x8] sm:$0xff]
        %v1600 = vld [vmem:[%s3 + $0x10] sm:$0xff]
        %v1601 = vld [vmem:[%s3 + $0x18] sm:$0xf]
        %v1602 = vld [vmem:[%s4] sm:$0xff]
        %v1603 = vld [vmem:[%s4 + $0x8] sm:$0xff]
        %v1604 = vld [vmem:[%s4 + $0x10] sm:$0xff]
        %v1605 = vld [vmem:[%s4 + $0x18] sm:$0xf]
        %1607 = vset.pattern.permute.xlu0 0
        %1608 = vperm.xlu0 %1607, %v1602
        %v1609 = vpop.permute.xlu0 %1608
        %1612 = vset.pattern.permute.xlu0 0
        %1613 = vperm.xlu0 %1612, %v1603
        %v1614 = vpop.permute.xlu0 %1613
        %1617 = vset.pattern.permute.xlu0 0
        %1618 = vperm.xlu0 %1617, %v1604
        %v1619 = vpop.permute.xlu0 %1618
        %1622 = vset.pattern.permute.xlu0 0
        %1623 = vperm.xlu0 %1622, %v1605
        %v1624 = vpop.permute.xlu0 %1623
        %vm1626 = vcmask 785408
        %v1628 = vsel %vm1626, %v1598, 0
        %v1631 = vsel %vm1626, %v1599, 0
        %v1634 = vsel %vm1626, %v1600, 0
        %v1637 = vsel %vm1626, %v1601, 0
        %1639 = vmatprep.subr.mxu0 0.0
        %1640 = vmatpush1.msra.mxu0 0.0
        %1641 = vmatprep.subr.mxu0 0.0
        %1642 = vmatpush1.msra.mxu0 0.0
        %1643 = vmatprep.subr.mxu0 0.0
        %1644 = vmatpush1.msra.mxu0 0.0
        %1645 = vmatprep.subr.mxu0 0.0
        %1646 = vmatpush1.msra.mxu0 0.0
        %1647 = vmatprep.subr.mxu0 %v1591
        %1648 = vmatpush1.msra.mxu0 %v1590
        %1649 = vmatprep.subr.mxu0 %v1583
        %1650 = vmatpush1.msra.mxu0 %v1582
        %1651 = vmatprep.subr.mxu0 %v1575
        %1652 = vmatpush1.msra.mxu0 %v1574
        %1653 = vmatprep.subr.mxu0 %v1567
        %1654 = vmatpush1.msra.mxu0 %v1566
        %1655 = vmatprep.subr.mxu0 %v1559
        %1656 = vmatpush1.msra.mxu0 %v1558
        %1657 = vmatprep.subr.mxu0 %v1551
        %1658 = vmatpush1.msra.mxu0 %v1550
        %1659 = vmatprep.subr.mxu0 %v1543
        %1660 = vmatpush1.msra.mxu0 %v1542
        %1661 = vmatprep.subr.mxu0 %v1535
        %1662 = vmatpush1.msra.mxu0 %v1534
        %1663 = vmatprep.subr.mxu0 %v1527
        %1664 = vmatpush1.msra.mxu0 %v1526
        %1665 = vmatprep.subr.mxu0 %v1519
        %1666 = vmatpush1.msra.mxu0 %v1518
        %1667 = vmatprep.subr.mxu0 %v1511
        %1668 = vmatpush1.msra.mxu0 %v1510
        %1669 = vmatprep.subr.mxu0 %v1503
        %1670 = vmatpush1.msra.mxu0 %v1502
        %1671 = vmatprep.subr.mxu0 0.0
        %1672 = vmatpush2.msra.mxu0 0.0
        %1673 = vmatprep.subr.mxu0 0.0
        %1674 = vmatpush2.msra.mxu0 0.0
        %1675 = vmatprep.subr.mxu0 0.0
        %1676 = vmatpush2.msra.mxu0 0.0
        %1677 = vmatprep.subr.mxu0 0.0
        %1678 = vmatpush2.msra.mxu0 0.0
        %1679 = vmatprep.subr.mxu0 0.0
        %1680 = vmatpush2.msra.mxu0 0.0
        %1681 = vmatprep.subr.mxu0 0.0
        %1682 = vmatpush2.msra.mxu0 0.0
        %1683 = vmatprep.subr.mxu0 0.0
        %1684 = vmatpush2.msra.mxu0 0.0
        %1685 = vmatprep.subr.mxu0 0.0
        %1686 = vmatpush2.msra.mxu0 0.0
        %1687 = vmatprep.subr.mxu0 0.0
        %1688 = vmatpush2.msra.mxu0 0.0
        %1689 = vmatprep.subr.mxu0 0.0
        %1690 = vmatpush2.msra.mxu0 0.0
        %1691 = vmatprep.subr.mxu0 0.0
        %1692 = vmatpush2.msra.mxu0 0.0
        %1693 = vmatprep.subr.mxu0 0.0
        %1694 = vmatpush2.msra.mxu0 0.0
        %1695 = vmatprep.subr.mxu0 0.0
        %1696 = vmatpush2.msra.mxu0 0.0
        %1697 = vmatprep.subr.mxu0 0.0
        %1698 = vmatpush2.msra.mxu0 0.0
        %1699 = vmatprep.subr.mxu0 0.0
        %1700 = vmatpush2.msra.mxu0 0.0
        %1701 = vmatprep.subr.mxu0 0.0
        %1702 = vmatpush2.msra.mxu0 0.0
        %1703 = vmatprep.mubr.f32.mxu0 0.0
        %1704 = vmatmul.mubr.f32.gmra.mxu0 %v1628
        %v1705 = vpop.f32.mrf.mxu0
        %v1706 = vadd.f32 %v1609, %v1705
        %v1707 = vpop.f32.mrf.mxu0
        %v1708 = vadd.f32 %v1609, %v1707
        %1709 = vmatprep.mubr.f32.mxu0 0.0
        %1710 = vmatmul.mubr.f32.gmra.mxu0 %v1631
        %v1711 = vpop.f32.mrf.mxu0
        %v1712 = vadd.f32 %v1614, %v1711
        %v1713 = vpop.f32.mrf.mxu0
        %v1714 = vadd.f32 %v1614, %v1713
        %1715 = vmatprep.mubr.f32.mxu0 0.0
        %1716 = vmatmul.mubr.f32.gmra.mxu0 %v1634
        %v1717 = vpop.f32.mrf.mxu0
        %v1718 = vadd.f32 %v1619, %v1717
        %v1719 = vpop.f32.mrf.mxu0
        %v1720 = vadd.f32 %v1619, %v1719
        %1721 = vmatprep.mubr.f32.mxu0 0.0
        %1722 = vmatmul.mubr.f32.gmra.mxu0 %v1637
        %v1723 = vpop.f32.mrf.mxu0
        %v1724 = vadd.f32 %v1624, %v1723
        %v1725 = vpop.f32.mrf.mxu0
        %v1726 = vadd.f32 %v1624, %v1725
        %1727 = vdwg.mxu0
        %1728 = vmatprep.subr.mxu0 0.0
        %1729 = vmatpush1.msra.mxu0 0.0
        %1730 = vmatprep.subr.mxu0 0.0
        %1731 = vmatpush1.msra.mxu0 0.0
        %1732 = vmatprep.subr.mxu0 0.0
        %1733 = vmatpush1.msra.mxu0 0.0
        %1734 = vmatprep.subr.mxu0 0.0
        %1735 = vmatpush1.msra.mxu0 0.0
        %1736 = vmatprep.subr.mxu0 %v1593
        %1737 = vmatpush1.msra.mxu0 %v1592
        %1738 = vmatprep.subr.mxu0 %v1585
        %1739 = vmatpush1.msra.mxu0 %v1584
        %1740 = vmatprep.subr.mxu0 %v1577
        %1741 = vmatpush1.msra.mxu0 %v1576
        %1742 = vmatprep.subr.mxu0 %v1569
        %1743 = vmatpush1.msra.mxu0 %v1568
        %1744 = vmatprep.subr.mxu0 %v1561
        %1745 = vmatpush1.msra.mxu0 %v1560
        %1746 = vmatprep.subr.mxu0 %v1553
        %1747 = vmatpush1.msra.mxu0 %v1552
        %1748 = vmatprep.subr.mxu0 %v1545
        %1749 = vmatpush1.msra.mxu0 %v1544
        %1750 = vmatprep.subr.mxu0 %v1537
        %1751 = vmatpush1.msra.mxu0 %v1536
        %1752 = vmatprep.subr.mxu0 %v1529
        %1753 = vmatpush1.msra.mxu0 %v1528
        %1754 = vmatprep.subr.mxu0 %v1521
        %1755 = vmatpush1.msra.mxu0 %v1520
        %1756 = vmatprep.subr.mxu0 %v1513
        %1757 = vmatpush1.msra.mxu0 %v1512
        %1758 = vmatprep.subr.mxu0 %v1505
        %1759 = vmatpush1.msra.mxu0 %v1504
        %1760 = vmatprep.subr.mxu0 0.0
        %1761 = vmatpush2.msra.mxu0 0.0
        %1762 = vmatprep.subr.mxu0 0.0
        %1763 = vmatpush2.msra.mxu0 0.0
        %1764 = vmatprep.subr.mxu0 0.0
        %1765 = vmatpush2.msra.mxu0 0.0
        %1766 = vmatprep.subr.mxu0 0.0
        %1767 = vmatpush2.msra.mxu0 0.0
        %1768 = vmatprep.subr.mxu0 0.0
        %1769 = vmatpush2.msra.mxu0 0.0
        %1770 = vmatprep.subr.mxu0 0.0
        %1771 = vmatpush2.msra.mxu0 0.0
        %1772 = vmatprep.subr.mxu0 0.0
        %1773 = vmatpush2.msra.mxu0 0.0
        %1774 = vmatprep.subr.mxu0 0.0
        %1775 = vmatpush2.msra.mxu0 0.0
        %1776 = vmatprep.subr.mxu0 0.0
        %1777 = vmatpush2.msra.mxu0 0.0
        %1778 = vmatprep.subr.mxu0 0.0
        %1779 = vmatpush2.msra.mxu0 0.0
        %1780 = vmatprep.subr.mxu0 0.0
        %1781 = vmatpush2.msra.mxu0 0.0
        %1782 = vmatprep.subr.mxu0 0.0
        %1783 = vmatpush2.msra.mxu0 0.0
        %1784 = vmatprep.subr.mxu0 0.0
        %1785 = vmatpush2.msra.mxu0 0.0
        %1786 = vmatprep.subr.mxu0 0.0
        %1787 = vmatpush2.msra.mxu0 0.0
        %1788 = vmatprep.subr.mxu0 0.0
        %1789 = vmatpush2.msra.mxu0 0.0
        %1790 = vmatprep.subr.mxu0 0.0
        %1791 = vmatpush2.msra.mxu0 0.0
        %1792 = vmatprep.mubr.f32.mxu0 0.0
        %1793 = vmatmul.mubr.f32.gmra.mxu0 %v1628
        %v1794 = vpop.f32.mrf.mxu0
        %v1795 = vadd.f32 %v1609, %v1794
        %v1796 = vpop.f32.mrf.mxu0
        %v1797 = vadd.f32 %v1609, %v1796
        %1798 = vmatprep.mubr.f32.mxu0 0.0
        %1799 = vmatmul.mubr.f32.gmra.mxu0 %v1631
        %v1800 = vpop.f32.mrf.mxu0
        %v1801 = vadd.f32 %v1614, %v1800
        %v1802 = vpop.f32.mrf.mxu0
        %v1803 = vadd.f32 %v1614, %v1802
        %1804 = vmatprep.mubr.f32.mxu0 0.0
        %1805 = vmatmul.mubr.f32.gmra.mxu0 %v1634
        %v1806 = vpop.f32.mrf.mxu0
        %v1807 = vadd.f32 %v1619, %v1806
        %v1808 = vpop.f32.mrf.mxu0
        %v1809 = vadd.f32 %v1619, %v1808
        %1810 = vmatprep.mubr.f32.mxu0 0.0
        %1811 = vmatmul.mubr.f32.gmra.mxu0 %v1637
        %v1812 = vpop.f32.mrf.mxu0
        %v1813 = vadd.f32 %v1624, %v1812
        %v1814 = vpop.f32.mrf.mxu0
        %v1815 = vadd.f32 %v1624, %v1814
        %1816 = vdwg.mxu0
        %1817 = vmatprep.subr.mxu0 0.0
        %1818 = vmatpush1.msra.mxu0 0.0
        %1819 = vmatprep.subr.mxu0 0.0
        %1820 = vmatpush1.msra.mxu0 0.0
        %1821 = vmatprep.subr.mxu0 0.0
        %1822 = vmatpush1.msra.mxu0 0.0
        %1823 = vmatprep.subr.mxu0 0.0
        %1824 = vmatpush1.msra.mxu0 0.0
        %1825 = vmatprep.subr.mxu0 %v1595
        %1826 = vmatpush1.msra.mxu0 %v1594
        %1827 = vmatprep.subr.mxu0 %v1587
        %1828 = vmatpush1.msra.mxu0 %v1586
        %1829 = vmatprep.subr.mxu0 %v1579
        %1830 = vmatpush1.msra.mxu0 %v1578
        %1831 = vmatprep.subr.mxu0 %v1571
        %1832 = vmatpush1.msra.mxu0 %v1570
        %1833 = vmatprep.subr.mxu0 %v1563
        %1834 = vmatpush1.msra.mxu0 %v1562
        %1835 = vmatprep.subr.mxu0 %v1555
        %1836 = vmatpush1.msra.mxu0 %v1554
        %1837 = vmatprep.subr.mxu0 %v1547
        %1838 = vmatpush1.msra.mxu0 %v1546
        %1839 = vmatprep.subr.mxu0 %v1539
        %1840 = vmatpush1.msra.mxu0 %v1538
        %1841 = vmatprep.subr.mxu0 %v1531
        %1842 = vmatpush1.msra.mxu0 %v1530
        %1843 = vmatprep.subr.mxu0 %v1523
        %1844 = vmatpush1.msra.mxu0 %v1522
        %1845 = vmatprep.subr.mxu0 %v1515
        %1846 = vmatpush1.msra.mxu0 %v1514
        %1847 = vmatprep.subr.mxu0 %v1507
        %1848 = vmatpush1.msra.mxu0 %v1506
        %1849 = vmatprep.subr.mxu0 0.0
        %1850 = vmatpush2.msra.mxu0 0.0
        %1851 = vmatprep.subr.mxu0 0.0
        %1852 = vmatpush2.msra.mxu0 0.0
        %1853 = vmatprep.subr.mxu0 0.0
        %1854 = vmatpush2.msra.mxu0 0.0
        %1855 = vmatprep.subr.mxu0 0.0
        %1856 = vmatpush2.msra.mxu0 0.0
        %1857 = vmatprep.subr.mxu0 0.0
        %1858 = vmatpush2.msra.mxu0 0.0
        %1859 = vmatprep.subr.mxu0 0.0
        %1860 = vmatpush2.msra.mxu0 0.0
        %1861 = vmatprep.subr.mxu0 0.0
        %1862 = vmatpush2.msra.mxu0 0.0
        %1863 = vmatprep.subr.mxu0 0.0
        %1864 = vmatpush2.msra.mxu0 0.0
        %1865 = vmatprep.subr.mxu0 0.0
        %1866 = vmatpush2.msra.mxu0 0.0
        %1867 = vmatprep.subr.mxu0 0.0
        %1868 = vmatpush2.msra.mxu0 0.0
        %1869 = vmatprep.subr.mxu0 0.0
        %1870 = vmatpush2.msra.mxu0 0.0
        %1871 = vmatprep.subr.mxu0 0.0
        %1872 = vmatpush2.msra.mxu0 0.0
        %1873 = vmatprep.subr.mxu0 0.0
        %1874 = vmatpush2.msra.mxu0 0.0
        %1875 = vmatprep.subr.mxu0 0.0
        %1876 = vmatpush2.msra.mxu0 0.0
        %1877 = vmatprep.subr.mxu0 0.0
        %1878 = vmatpush2.msra.mxu0 0.0
        %1879 = vmatprep.subr.mxu0 0.0
        %1880 = vmatpush2.msra.mxu0 0.0
        %1881 = vmatprep.mubr.f32.mxu0 0.0
        %1882 = vmatmul.mubr.f32.gmra.mxu0 %v1628
        %v1883 = vpop.f32.mrf.mxu0
        %v1884 = vadd.f32 %v1609, %v1883
        %v1885 = vpop.f32.mrf.mxu0
        %v1886 = vadd.f32 %v1609, %v1885
        %1887 = vmatprep.mubr.f32.mxu0 0.0
        %1888 = vmatmul.mubr.f32.gmra.mxu0 %v1631
        %v1889 = vpop.f32.mrf.mxu0
        %v1890 = vadd.f32 %v1614, %v1889
        %v1891 = vpop.f32.mrf.mxu0
        %v1892 = vadd.f32 %v1614, %v1891
        %1893 = vmatprep.mubr.f32.mxu0 0.0
        %1894 = vmatmul.mubr.f32.gmra.mxu0 %v1634
        %v1895 = vpop.f32.mrf.mxu0
        %v1896 = vadd.f32 %v1619, %v1895
        %v1897 = vpop.f32.mrf.mxu0
        %v1898 = vadd.f32 %v1619, %v1897
        %1899 = vmatprep.mubr.f32.mxu0 0.0
        %1900 = vmatmul.mubr.f32.gmra.mxu0 %v1637
        %v1901 = vpop.f32.mrf.mxu0
        %v1902 = vadd.f32 %v1624, %v1901
        %v1903 = vpop.f32.mrf.mxu0
        %v1904 = vadd.f32 %v1624, %v1903
        %1905 = vdwg.mxu0
        %1906 = vmatprep.subr.mxu0 0.0
        %1907 = vmatpush1.msra.mxu0 0.0
        %1908 = vmatprep.subr.mxu0 0.0
        %1909 = vmatpush1.msra.mxu0 0.0
        %1910 = vmatprep.subr.mxu0 0.0
        %1911 = vmatpush1.msra.mxu0 0.0
        %1912 = vmatprep.subr.mxu0 0.0
        %1913 = vmatpush1.msra.mxu0 0.0
        %1914 = vmatprep.subr.mxu0 %v1597
        %1915 = vmatpush1.msra.mxu0 %v1596
        %1916 = vmatprep.subr.mxu0 %v1589
        %1917 = vmatpush1.msra.mxu0 %v1588
        %1918 = vmatprep.subr.mxu0 %v1581
        %1919 = vmatpush1.msra.mxu0 %v1580
        %1920 = vmatprep.subr.mxu0 %v1573
        %1921 = vmatpush1.msra.mxu0 %v1572
        %1922 = vmatprep.subr.mxu0 %v1565
        %1923 = vmatpush1.msra.mxu0 %v1564
        %1924 = vmatprep.subr.mxu0 %v1557
        %1925 = vmatpush1.msra.mxu0 %v1556
        %1926 = vmatprep.subr.mxu0 %v1549
        %1927 = vmatpush1.msra.mxu0 %v1548
        %1928 = vmatprep.subr.mxu0 %v1541
        %1929 = vmatpush1.msra.mxu0 %v1540
        %1930 = vmatprep.subr.mxu0 %v1533
        %1931 = vmatpush1.msra.mxu0 %v1532
        %1932 = vmatprep.subr.mxu0 %v1525
        %1933 = vmatpush1.msra.mxu0 %v1524
        %1934 = vmatprep.subr.mxu0 %v1517
        %1935 = vmatpush1.msra.mxu0 %v1516
        %1936 = vmatprep.subr.mxu0 %v1509
        %1937 = vmatpush1.msra.mxu0 %v1508
        %1938 = vmatprep.subr.mxu0 0.0
        %1939 = vmatpush2.msra.mxu0 0.0
        %1940 = vmatprep.subr.mxu0 0.0
        %1941 = vmatpush2.msra.mxu0 0.0
        %1942 = vmatprep.subr.mxu0 0.0
        %1943 = vmatpush2.msra.mxu0 0.0
        %1944 = vmatprep.subr.mxu0 0.0
        %1945 = vmatpush2.msra.mxu0 0.0
        %1946 = vmatprep.subr.mxu0 0.0
        %1947 = vmatpush2.msra.mxu0 0.0
        %1948 = vmatprep.subr.mxu0 0.0
        %1949 = vmatpush2.msra.mxu0 0.0
        %1950 = vmatprep.subr.mxu0 0.0
        %1951 = vmatpush2.msra.mxu0 0.0
        %1952 = vmatprep.subr.mxu0 0.0
        %1953 = vmatpush2.msra.mxu0 0.0
        %1954 = vmatprep.subr.mxu0 0.0
        %1955 = vmatpush2.msra.mxu0 0.0
        %1956 = vmatprep.subr.mxu0 0.0
        %1957 = vmatpush2.msra.mxu0 0.0
        %1958 = vmatprep.subr.mxu0 0.0
        %1959 = vmatpush2.msra.mxu0 0.0
        %1960 = vmatprep.subr.mxu0 0.0
        %1961 = vmatpush2.msra.mxu0 0.0
        %1962 = vmatprep.subr.mxu0 0.0
        %1963 = vmatpush2.msra.mxu0 0.0
        %1964 = vmatprep.subr.mxu0 0.0
        %1965 = vmatpush2.msra.mxu0 0.0
        %1966 = vmatprep.subr.mxu0 0.0
        %1967 = vmatpush2.msra.mxu0 0.0
        %1968 = vmatprep.subr.mxu0 0.0
        %1969 = vmatpush2.msra.mxu0 0.0
        %1970 = vmatprep.mubr.f32.mxu0 0.0
        %1971 = vmatmul.mubr.f32.gmra.mxu0 %v1628
        %v1972 = vpop.f32.mrf.mxu0
        %v1973 = vadd.f32 %v1609, %v1972
        %v1974 = vpop.f32.mrf.mxu0
        %v1975 = vadd.f32 %v1609, %v1974
        %1976 = vmatprep.mubr.f32.mxu0 0.0
        %1977 = vmatmul.mubr.f32.gmra.mxu0 %v1631
        %v1978 = vpop.f32.mrf.mxu0
        %v1979 = vadd.f32 %v1614, %v1978
        %v1980 = vpop.f32.mrf.mxu0
        %v1981 = vadd.f32 %v1614, %v1980
        %1982 = vmatprep.mubr.f32.mxu0 0.0
        %1983 = vmatmul.mubr.f32.gmra.mxu0 %v1634
        %v1984 = vpop.f32.mrf.mxu0
        %v1985 = vadd.f32 %v1619, %v1984
        %v1986 = vpop.f32.mrf.mxu0
        %v1987 = vadd.f32 %v1619, %v1986
        %1988 = vmatprep.mubr.f32.mxu0 0.0
        %1989 = vmatmul.mubr.f32.gmra.mxu0 %v1637
        %v1990 = vpop.f32.mrf.mxu0
        %v1991 = vadd.f32 %v1624, %v1990
        %v1992 = vpop.f32.mrf.mxu0
        %v1993 = vadd.f32 %v1624, %v1992
        %1994 = vdwg.mxu0
        %1995 = vst [vmem:[#allocation2] sm:$0xff] %v1706
        %1996 = vst [vmem:[#allocation2 + $0x8] sm:$0xff] %v1708
        %1997 = vst [vmem:[#allocation2 + $0x10] sm:$0xff] %v1795
        %1998 = vst [vmem:[#allocation2 + $0x18] sm:$0xff] %v1797
        %1999 = vst [vmem:[#allocation2 + $0x20] sm:$0xff] %v1884
        %2000 = vst [vmem:[#allocation2 + $0x28] sm:$0xff] %v1886
        %2001 = vst [vmem:[#allocation2 + $0x30] sm:$0xff] %v1973
        %2002 = vst [vmem:[#allocation2 + $0x38] sm:$0xff] %v1975
        %2003 = vst [vmem:[#allocation2 + $0x40] sm:$0xff] %v1712
        %2004 = vst [vmem:[#allocation2 + $0x48] sm:$0xff] %v1714
        %2005 = vst [vmem:[#allocation2 + $0x50] sm:$0xff] %v1801
        %2006 = vst [vmem:[#allocation2 + $0x58] sm:$0xff] %v1803
        %2007 = vst [vmem:[#allocation2 + $0x60] sm:$0xff] %v1890
        %2008 = vst [vmem:[#allocation2 + $0x68] sm:$0xff] %v1892
        %2009 = vst [vmem:[#allocation2 + $0x70] sm:$0xff] %v1979
        %2010 = vst [vmem:[#allocation2 + $0x78] sm:$0xff] %v1981
        %2011 = vst [vmem:[#allocation2 + $0x80] sm:$0xff] %v1718
        %2012 = vst [vmem:[#allocation2 + $0x88] sm:$0xff] %v1720
        %2013 = vst [vmem:[#allocation2 + $0x90] sm:$0xff] %v1807
        %2014 = vst [vmem:[#allocation2 + $0x98] sm:$0xff] %v1809
        %2015 = vst [vmem:[#allocation2 + $0xa0] sm:$0xff] %v1896
        %2016 = vst [vmem:[#allocation2 + $0xa8] sm:$0xff] %v1898
        %2017 = vst [vmem:[#allocation2 + $0xb0] sm:$0xff] %v1985
        %2018 = vst [vmem:[#allocation2 + $0xb8] sm:$0xff] %v1987
        %2019 = vst [vmem:[#allocation2 + $0xc0] sm:$0xf] %v1724
        %2020 = vst [vmem:[#allocation2 + $0xc8] sm:$0xf] %v1726
        %2021 = vst [vmem:[#allocation2 + $0xd0] sm:$0xf] %v1813
        %2022 = vst [vmem:[#allocation2 + $0xd8] sm:$0xf] %v1815
        %2023 = vst [vmem:[#allocation2 + $0xe0] sm:$0xf] %v1902
        %2024 = vst [vmem:[#allocation2 + $0xe8] sm:$0xf] %v1904
        %2025 = vst [vmem:[#allocation2 + $0xf0] sm:$0xf] %v1991
        %2026 = vst [vmem:[#allocation2 + $0xf8] sm:$0xf] %v1993
        %v2027 = vld [vmem:[#allocation2] sm:$0xf]
        %v2028 = vld [vmem:[#allocation2 + $0x8] sm:$0xf]
        %v2029 = vld [vmem:[#allocation2 + $0x10] sm:$0xf]
        %v2030 = vld [vmem:[#allocation2 + $0x18] sm:$0xf]
        %v2031 = vld [vmem:[#allocation2 + $0x20] sm:$0xf]
        %v2032 = vld [vmem:[#allocation2 + $0x28] sm:$0xf]
        %v2033 = vld [vmem:[#allocation2 + $0x30] sm:$0xf]
        %v2034 = vld [vmem:[#allocation2 + $0x38] sm:$0xf]
        %v2035 = vsub.f32 0.0, %v2027
        %v2036 = vsub.f32 0.0, %v2028
        %v2037 = vsub.f32 0.0, %v2029
        %v2038 = vsub.f32 0.0, %v2030
        %v2039 = vsub.f32 0.0, %v2031
        %v2040 = vsub.f32 0.0, %v2032
        %v2041 = vsub.f32 0.0, %v2033
        %v2042 = vsub.f32 0.0, %v2034
        %v2043 = vmul.f32 %v2035, 1.442695
        %v2044 = vpow.pop %v2043
        %v2045 = vmul.f32 %v2036, 1.442695
        %v2046 = vpow.pop %v2045
        %v2047 = vmul.f32 %v2037, 1.442695
        %v2048 = vpow.pop %v2047
        %v2049 = vmul.f32 %v2038, 1.442695
        %v2050 = vpow.pop %v2049
        %v2051 = vmul.f32 %v2039, 1.442695
        %v2052 = vpow.pop %v2051
        %v2053 = vmul.f32 %v2040, 1.442695
        %v2054 = vpow.pop %v2053
        %v2055 = vmul.f32 %v2041, 1.442695
        %v2056 = vpow.pop %v2055
        %v2057 = vmul.f32 %v2042, 1.442695
        %v2058 = vpow.pop %v2057
        %v2059 = vadd.f32 %v2044, 1.0
        %v2060 = vadd.f32 %v2046, 1.0
        %v2061 = vadd.f32 %v2048, 1.0
        %v2062 = vadd.f32 %v2050, 1.0
        %v2063 = vadd.f32 %v2052, 1.0
        %v2064 = vadd.f32 %v2054, 1.0
        %v2065 = vadd.f32 %v2056, 1.0
        %v2066 = vadd.f32 %v2058, 1.0
        %v2067 = vrcp.pop %v2059
        %v2068 = vrcp.pop %v2060
        %v2069 = vrcp.pop %v2061
        %v2070 = vrcp.pop %v2062
        %v2071 = vrcp.pop %v2063
        %v2072 = vrcp.pop %v2064
        %v2073 = vrcp.pop %v2065
        %v2074 = vrcp.pop %v2066
        %2075 = vst [vmem:[%s347] sm:$0xf] %v2067
        %2076 = vst [vmem:[%s347 + $0x8] sm:$0xf] %v2068
        %2077 = vst [vmem:[%s347 + $0x10] sm:$0xf] %v2069
        %2078 = vst [vmem:[%s347 + $0x18] sm:$0xf] %v2070
        %2079 = vst [vmem:[%s347 + $0x20] sm:$0xf] %v2071
        %2080 = vst [vmem:[%s347 + $0x28] sm:$0xf] %v2072
        %2081 = vst [vmem:[%s347 + $0x30] sm:$0xf] %v2073
        %2082 = vst [vmem:[%s347 + $0x38] sm:$0xf] %v2074
        %v2083 = vld [vmem:[%s316] sm:$0x3f]
        %v2084 = vld [vmem:[%s316 + $0x8] sm:$0x3f]
        %v2085 = vld [vmem:[%s316 + $0x10] sm:$0x3f]
        %v2086 = vld [vmem:[%s316 + $0x18] sm:$0x3f]
        %v2087 = vld [vmem:[%s316 + $0x20] sm:$0x3f]
        %v2088 = vld [vmem:[%s316 + $0x28] sm:$0x3f]
        %v2089 = vld [vmem:[%s316 + $0x30] sm:$0x3f]
        %v2090 = vld [vmem:[%s316 + $0x38] sm:$0x3f]
        %v2091 = vld [vmem:[%s316] sm:$0xc0]
        %v2092 = vld [vmem:[%s316 + $0x8] sm:$0xc0]
        %v2093 = vld [vmem:[%s316 + $0x10] sm:$0xc0]
        %v2094 = vld [vmem:[%s316 + $0x18] sm:$0xc0]
        %v2095 = vld [vmem:[%s316 + $0x20] sm:$0xc0]
        %v2096 = vld [vmem:[%s316 + $0x28] sm:$0xc0]
        %v2097 = vld [vmem:[%s316 + $0x30] sm:$0xc0]
        %v2098 = vld [vmem:[%s316 + $0x38] sm:$0xc0]
        %v2099 = vld [vmem:[%s316 + $0x40] sm:$0xf]
        %v2100 = vld [vmem:[%s316 + $0x48] sm:$0xf]
        %v2101 = vld [vmem:[%s316 + $0x50] sm:$0xf]
        %v2102 = vld [vmem:[%s316 + $0x58] sm:$0xf]
        %v2103 = vld [vmem:[%s316 + $0x60] sm:$0xf]
        %v2104 = vld [vmem:[%s316 + $0x68] sm:$0xf]
        %v2105 = vld [vmem:[%s316 + $0x70] sm:$0xf]
        %v2106 = vld [vmem:[%s316 + $0x78] sm:$0xf]
        %v2107 = vld [vmem:[%s316 + $0x40] sm:$0xf0]
        %v2108 = vld [vmem:[%s316 + $0x48] sm:$0xf0]
        %v2109 = vld [vmem:[%s316 + $0x50] sm:$0xf0]
        %v2110 = vld [vmem:[%s316 + $0x58] sm:$0xf0]
        %v2111 = vld [vmem:[%s316 + $0x60] sm:$0xf0]
        %v2112 = vld [vmem:[%s316 + $0x68] sm:$0xf0]
        %v2113 = vld [vmem:[%s316 + $0x70] sm:$0xf0]
        %v2114 = vld [vmem:[%s316 + $0x78] sm:$0xf0]
        %v2115 = vld [vmem:[%s316 + $0x80] sm:$0x3]
        %v2116 = vld [vmem:[%s316 + $0x88] sm:$0x3]
        %v2117 = vld [vmem:[%s316 + $0x90] sm:$0x3]
        %v2118 = vld [vmem:[%s316 + $0x98] sm:$0x3]
        %v2119 = vld [vmem:[%s316 + $0xa0] sm:$0x3]
        %v2120 = vld [vmem:[%s316 + $0xa8] sm:$0x3]
        %v2121 = vld [vmem:[%s316 + $0xb0] sm:$0x3]
        %v2122 = vld [vmem:[%s316 + $0xb8] sm:$0x3]
        %v2123 = vld [vmem:[%s316 + $0x80] sm:$0x3c]
        %v2124 = vld [vmem:[%s316 + $0x88] sm:$0x3c]
        %v2125 = vld [vmem:[%s316 + $0x90] sm:$0x3c]
        %v2126 = vld [vmem:[%s316 + $0x98] sm:$0x3c]
        %v2127 = vld [vmem:[%s316 + $0xa0] sm:$0x3c]
        %v2128 = vld [vmem:[%s316 + $0xa8] sm:$0x3c]
        %v2129 = vld [vmem:[%s316 + $0xb0] sm:$0x3c]
        %v2130 = vld [vmem:[%s316 + $0xb8] sm:$0x3c]
        %v2131 = vld [vmem:[%s316 + $0x80] sm:$0xc0]
        %v2132 = vld [vmem:[%s316 + $0x88] sm:$0xc0]
        %v2133 = vld [vmem:[%s316 + $0x90] sm:$0xc0]
        %v2134 = vld [vmem:[%s316 + $0x98] sm:$0xc0]
        %v2135 = vld [vmem:[%s316 + $0xa0] sm:$0xc0]
        %v2136 = vld [vmem:[%s316 + $0xa8] sm:$0xc0]
        %v2137 = vld [vmem:[%s316 + $0xb0] sm:$0xc0]
        %v2138 = vld [vmem:[%s316 + $0xb8] sm:$0xc0]
        %v2139 = vld [vmem:[%s316 + $0xc0] sm:$0x3]
        %v2140 = vld [vmem:[%s316 + $0xc8] sm:$0x3]
        %v2141 = vld [vmem:[%s316 + $0xd0] sm:$0x3]
        %v2142 = vld [vmem:[%s316 + $0xd8] sm:$0x3]
        %v2143 = vld [vmem:[%s316 + $0xe0] sm:$0x3]
        %v2144 = vld [vmem:[%s316 + $0xe8] sm:$0x3]
        %v2145 = vld [vmem:[%s316 + $0xf0] sm:$0x3]
        %v2146 = vld [vmem:[%s316 + $0xf8] sm:$0x3]
        %v2147 = vld [vmem:[#allocation2 + $0x40] sm:$0x3f]
        %v2148 = vld [vmem:[#allocation2 + $0x48] sm:$0x3f]
        %v2149 = vld [vmem:[#allocation2 + $0x50] sm:$0x3f]
        %v2150 = vld [vmem:[#allocation2 + $0x58] sm:$0x3f]
        %v2151 = vld [vmem:[#allocation2 + $0x60] sm:$0x3f]
        %v2152 = vld [vmem:[#allocation2 + $0x68] sm:$0x3f]
        %v2153 = vld [vmem:[#allocation2 + $0x70] sm:$0x3f]
        %v2154 = vld [vmem:[#allocation2 + $0x78] sm:$0x3f]
        %vm2171 = vcmask 1041408
        %v2172 = vrot.slane %v2091, 6
        %v2173 = vrot.slane %v2099, 6
        %v2174 = vsel %vm2171, %v2172, %v2173
        %v2175 = vrot.slane %v2092, 6
        %v2176 = vrot.slane %v2100, 6
        %v2177 = vsel %vm2171, %v2175, %v2176
        %v2178 = vrot.slane %v2093, 6
        %v2179 = vrot.slane %v2101, 6
        %v2180 = vsel %vm2171, %v2178, %v2179
        %v2181 = vrot.slane %v2094, 6
        %v2182 = vrot.slane %v2102, 6
        %v2183 = vsel %vm2171, %v2181, %v2182
        %v2184 = vrot.slane %v2095, 6
        %v2185 = vrot.slane %v2103, 6
        %v2186 = vsel %vm2171, %v2184, %v2185
        %v2187 = vrot.slane %v2096, 6
        %v2188 = vrot.slane %v2104, 6
        %v2189 = vsel %vm2171, %v2187, %v2188
        %v2190 = vrot.slane %v2097, 6
        %v2191 = vrot.slane %v2105, 6
        %v2192 = vsel %vm2171, %v2190, %v2191
        %v2193 = vrot.slane %v2098, 6
        %v2194 = vrot.slane %v2106, 6
        %v2195 = vsel %vm2171, %v2193, %v2194
        %v2204 = vmul.f32 %v2147, %v2174
        %v2205 = vmul.f32 %v2148, %v2177
        %v2206 = vmul.f32 %v2149, %v2180
        %v2207 = vmul.f32 %v2150, %v2183
        %v2208 = vmul.f32 %v2151, %v2186
        %v2209 = vmul.f32 %v2152, %v2189
        %v2210 = vmul.f32 %v2153, %v2192
        %v2211 = vmul.f32 %v2154, %v2195
        %v2212 = vadd.f32 %v2204, %v2083
        %v2213 = vadd.f32 %v2205, %v2084
        %v2214 = vadd.f32 %v2206, %v2085
        %v2215 = vadd.f32 %v2207, %v2086
        %v2216 = vadd.f32 %v2208, %v2087
        %v2217 = vadd.f32 %v2209, %v2088
        %v2218 = vadd.f32 %v2210, %v2089
        %v2219 = vadd.f32 %v2211, %v2090
        %v2228 = vrot.slane %v2212, 4
        %v2229 = vrot.slane %v2213, 4
        %v2230 = vrot.slane %v2214, 4
        %v2231 = vrot.slane %v2215, 4
        %v2232 = vrot.slane %v2216, 4
        %v2233 = vrot.slane %v2217, 4
        %v2234 = vrot.slane %v2218, 4
        %v2235 = vrot.slane %v2219, 4
        %2244 = vst [vmem:[%s347] sm:$0xf0] %v2228
        %2245 = vst [vmem:[%s347 + $0x8] sm:$0xf0] %v2229
        %2246 = vst [vmem:[%s347 + $0x10] sm:$0xf0] %v2230
        %2247 = vst [vmem:[%s347 + $0x18] sm:$0xf0] %v2231
        %2248 = vst [vmem:[%s347 + $0x20] sm:$0xf0] %v2232
        %2249 = vst [vmem:[%s347 + $0x28] sm:$0xf0] %v2233
        %2250 = vst [vmem:[%s347 + $0x30] sm:$0xf0] %v2234
        %2251 = vst [vmem:[%s347 + $0x38] sm:$0xf0] %v2235
        %2252 = vst [vmem:[%s347 + $0x40] sm:$0x3] %v2228
        %2253 = vst [vmem:[%s347 + $0x48] sm:$0x3] %v2229
        %2254 = vst [vmem:[%s347 + $0x50] sm:$0x3] %v2230
        %2255 = vst [vmem:[%s347 + $0x58] sm:$0x3] %v2231
        %2256 = vst [vmem:[%s347 + $0x60] sm:$0x3] %v2232
        %2257 = vst [vmem:[%s347 + $0x68] sm:$0x3] %v2233
        %2258 = vst [vmem:[%s347 + $0x70] sm:$0x3] %v2234
        %2259 = vst [vmem:[%s347 + $0x78] sm:$0x3] %v2235
        %v2260 = vld [vmem:[#allocation2 + $0x40] sm:$0xc0]
        %v2261 = vld [vmem:[#allocation2 + $0x48] sm:$0xc0]
        %v2262 = vld [vmem:[#allocation2 + $0x50] sm:$0xc0]
        %v2263 = vld [vmem:[#allocation2 + $0x58] sm:$0xc0]
        %v2264 = vld [vmem:[#allocation2 + $0x60] sm:$0xc0]
        %v2265 = vld [vmem:[#allocation2 + $0x68] sm:$0xc0]
        %v2266 = vld [vmem:[#allocation2 + $0x70] sm:$0xc0]
        %v2267 = vld [vmem:[#allocation2 + $0x78] sm:$0xc0]
        %v2268 = vld [vmem:[#allocation2 + $0x80] sm:$0xf]
        %v2269 = vld [vmem:[#allocation2 + $0x88] sm:$0xf]
        %v2270 = vld [vmem:[#allocation2 + $0x90] sm:$0xf]
        %v2271 = vld [vmem:[#allocation2 + $0x98] sm:$0xf]
        %v2272 = vld [vmem:[#allocation2 + $0xa0] sm:$0xf]
        %v2273 = vld [vmem:[#allocation2 + $0xa8] sm:$0xf]
        %v2274 = vld [vmem:[#allocation2 + $0xb0] sm:$0xf]
        %v2275 = vld [vmem:[#allocation2 + $0xb8] sm:$0xf]
        %v2276 = vmul.f32 %v2260, 1.442695
        %v2277 = vpow.pop %v2276
        %v2278 = vmul.f32 %v2261, 1.442695
        %v2279 = vpow.pop %v2278
        %v2280 = vmul.f32 %v2262, 1.442695
        %v2281 = vpow.pop %v2280
        %v2282 = vmul.f32 %v2263, 1.442695
        %v2283 = vpow.pop %v2282
        %v2284 = vmul.f32 %v2264, 1.442695
        %v2285 = vpow.pop %v2284
        %v2286 = vmul.f32 %v2265, 1.442695
        %v2287 = vpow.pop %v2286
        %v2288 = vmul.f32 %v2266, 1.442695
        %v2289 = vpow.pop %v2288
        %v2290 = vmul.f32 %v2267, 1.442695
        %v2291 = vpow.pop %v2290
        %v2292 = vmul.f32 %v2268, 1.442695
        %v2293 = vpow.pop %v2292
        %v2294 = vmul.f32 %v2269, 1.442695
        %v2295 = vpow.pop %v2294
        %v2296 = vmul.f32 %v2270, 1.442695
        %v2297 = vpow.pop %v2296
        %v2298 = vmul.f32 %v2271, 1.442695
        %v2299 = vpow.pop %v2298
        %v2300 = vmul.f32 %v2272, 1.442695
        %v2301 = vpow.pop %v2300
        %v2302 = vmul.f32 %v2273, 1.442695
        %v2303 = vpow.pop %v2302
        %v2304 = vmul.f32 %v2274, 1.442695
        %v2305 = vpow.pop %v2304
        %v2306 = vmul.f32 %v2275, 1.442695
        %v2307 = vpow.pop %v2306
        %v2324 = vrot.slane %v2107, 6
        %v2325 = vrot.slane %v2108, 6
        %v2326 = vrot.slane %v2109, 6
        %v2327 = vrot.slane %v2110, 6
        %v2328 = vrot.slane %v2111, 6
        %v2329 = vrot.slane %v2112, 6
        %v2330 = vrot.slane %v2113, 6
        %v2331 = vrot.slane %v2114, 6
        %v2332 = vrot.slane %v2115, 6
        %v2333 = vsel %vm2171, %v2324, %v2332
        %v2334 = vrot.slane %v2116, 6
        %v2335 = vsel %vm2171, %v2325, %v2334
        %v2336 = vrot.slane %v2117, 6
        %v2337 = vsel %vm2171, %v2326, %v2336
        %v2338 = vrot.slane %v2118, 6
        %v2339 = vsel %vm2171, %v2327, %v2338
        %v2340 = vrot.slane %v2119, 6
        %v2341 = vsel %vm2171, %v2328, %v2340
        %v2342 = vrot.slane %v2120, 6
        %v2343 = vsel %vm2171, %v2329, %v2342
        %v2344 = vrot.slane %v2121, 6
        %v2345 = vsel %vm2171, %v2330, %v2344
        %v2346 = vrot.slane %v2122, 6
        %v2347 = vsel %vm2171, %v2331, %v2346
        %v2364 = vmul.f32 %v2277, %v2324
        %v2365 = vmul.f32 %v2279, %v2325
        %v2366 = vmul.f32 %v2281, %v2326
        %v2367 = vmul.f32 %v2283, %v2327
        %v2368 = vmul.f32 %v2285, %v2328
        %v2369 = vmul.f32 %v2287, %v2329
        %v2370 = vmul.f32 %v2289, %v2330
        %v2371 = vmul.f32 %v2291, %v2331
        %v2372 = vmul.f32 %v2293, %v2333
        %v2373 = vmul.f32 %v2295, %v2335
        %v2374 = vmul.f32 %v2297, %v2337
        %v2375 = vmul.f32 %v2299, %v2339
        %v2376 = vmul.f32 %v2301, %v2341
        %v2377 = vmul.f32 %v2303, %v2343
        %v2378 = vmul.f32 %v2305, %v2345
        %v2379 = vmul.f32 %v2307, %v2347
        %vm2396 = vcmask 1043456
        %v2397 = vrot.slane %v2364, 4
        %v2398 = vrot.slane %v2372, 4
        %v2399 = vsel %vm2396, %v2397, %v2398
        %v2400 = vrot.slane %v2365, 4
        %v2401 = vrot.slane %v2373, 4
        %v2402 = vsel %vm2396, %v2400, %v2401
        %v2403 = vrot.slane %v2366, 4
        %v2404 = vrot.slane %v2374, 4
        %v2405 = vsel %vm2396, %v2403, %v2404
        %v2406 = vrot.slane %v2367, 4
        %v2407 = vrot.slane %v2375, 4
        %v2408 = vsel %vm2396, %v2406, %v2407
        %v2409 = vrot.slane %v2368, 4
        %v2410 = vrot.slane %v2376, 4
        %v2411 = vsel %vm2396, %v2409, %v2410
        %v2412 = vrot.slane %v2369, 4
        %v2413 = vrot.slane %v2377, 4
        %v2414 = vsel %vm2396, %v2412, %v2413
        %v2415 = vrot.slane %v2370, 4
        %v2416 = vrot.slane %v2378, 4
        %v2417 = vsel %vm2396, %v2415, %v2416
        %v2418 = vrot.slane %v2371, 4
        %v2419 = vrot.slane %v2379, 4
        %v2420 = vsel %vm2396, %v2418, %v2419
        %2429 = vst [vmem:[%s347 + $0x40] sm:$0xfc] %v2399
        %2430 = vst [vmem:[%s347 + $0x48] sm:$0xfc] %v2402
        %2431 = vst [vmem:[%s347 + $0x50] sm:$0xfc] %v2405
        %2432 = vst [vmem:[%s347 + $0x58] sm:$0xfc] %v2408
        %2433 = vst [vmem:[%s347 + $0x60] sm:$0xfc] %v2411
        %2434 = vst [vmem:[%s347 + $0x68] sm:$0xfc] %v2414
        %2435 = vst [vmem:[%s347 + $0x70] sm:$0xfc] %v2417
        %2436 = vst [vmem:[%s347 + $0x78] sm:$0xfc] %v2420
        %v2437 = vld [vmem:[#allocation2 + $0x80] sm:$0xf0]
        %v2438 = vld [vmem:[#allocation2 + $0x88] sm:$0xf0]
        %v2439 = vld [vmem:[#allocation2 + $0x90] sm:$0xf0]
        %v2440 = vld [vmem:[#allocation2 + $0x98] sm:$0xf0]
        %v2441 = vld [vmem:[#allocation2 + $0xa0] sm:$0xf0]
        %v2442 = vld [vmem:[#allocation2 + $0xa8] sm:$0xf0]
        %v2443 = vld [vmem:[#allocation2 + $0xb0] sm:$0xf0]
        %v2444 = vld [vmem:[#allocation2 + $0xb8] sm:$0xf0]
        %v2453 = vrot.slane %v2123, 6
        %v2454 = vrot.slane %v2124, 6
        %v2455 = vrot.slane %v2125, 6
        %v2456 = vrot.slane %v2126, 6
        %v2457 = vrot.slane %v2127, 6
        %v2458 = vrot.slane %v2128, 6
        %v2459 = vrot.slane %v2129, 6
        %v2460 = vrot.slane %v2130, 6
        %v2469 = vadd.f32 %v2437, %v2453
        %v2470 = vadd.f32 %v2438, %v2454
        %v2471 = vadd.f32 %v2439, %v2455
        %v2472 = vadd.f32 %v2440, %v2456
        %v2473 = vadd.f32 %v2441, %v2457
        %v2474 = vadd.f32 %v2442, %v2458
        %v2475 = vadd.f32 %v2443, %v2459
        %v2476 = vadd.f32 %v2444, %v2460
        %v2477 = vld [vmem:[#allocation2 + $0xc0] sm:$0xf]
        %v2478 = vld [vmem:[#allocation2 + $0xc8] sm:$0xf]
        %v2479 = vld [vmem:[#allocation2 + $0xd0] sm:$0xf]
        %v2480 = vld [vmem:[#allocation2 + $0xd8] sm:$0xf]
        %v2481 = vld [vmem:[#allocation2 + $0xe0] sm:$0xf]
        %v2482 = vld [vmem:[#allocation2 + $0xe8] sm:$0xf]
        %v2483 = vld [vmem:[#allocation2 + $0xf0] sm:$0xf]
        %v2484 = vld [vmem:[#allocation2 + $0xf8] sm:$0xf]
        %v2501 = vrot.slane %v2131, 6
        %v2502 = vrot.slane %v2139, 6
        %v2503 = vsel %vm2171, %v2501, %v2502
        %v2504 = vrot.slane %v2132, 6
        %v2505 = vrot.slane %v2140, 6
        %v2506 = vsel %vm2171, %v2504, %v2505
        %v2507 = vrot.slane %v2133, 6
        %v2508 = vrot.slane %v2141, 6
        %v2509 = vsel %vm2171, %v2507, %v2508
        %v2510 = vrot.slane %v2134, 6
        %v2511 = vrot.slane %v2142, 6
        %v2512 = vsel %vm2171, %v2510, %v2511
        %v2513 = vrot.slane %v2135, 6
        %v2514 = vrot.slane %v2143, 6
        %v2515 = vsel %vm2171, %v2513, %v2514
        %v2516 = vrot.slane %v2136, 6
        %v2517 = vrot.slane %v2144, 6
        %v2518 = vsel %vm2171, %v2516, %v2517
        %v2519 = vrot.slane %v2137, 6
        %v2520 = vrot.slane %v2145, 6
        %v2521 = vsel %vm2171, %v2519, %v2520
        %v2522 = vrot.slane %v2138, 6
        %v2523 = vrot.slane %v2146, 6
        %v2524 = vsel %vm2171, %v2522, %v2523
        %v2533 = vadd.f32 %v2477, %v2503
        %v2534 = vadd.f32 %v2478, %v2506
        %v2535 = vadd.f32 %v2479, %v2509
        %v2536 = vadd.f32 %v2480, %v2512
        %v2537 = vadd.f32 %v2481, %v2515
        %v2538 = vadd.f32 %v2482, %v2518
        %v2539 = vadd.f32 %v2483, %v2521
        %v2540 = vadd.f32 %v2484, %v2524
        %v2541 = vand.u32 2147483647, %v2533
        %v2542 = vand.u32 2147483647, %v2534
        %v2543 = vand.u32 2147483647, %v2535
        %v2544 = vand.u32 2147483647, %v2536
        %v2545 = vand.u32 2147483647, %v2537
        %v2546 = vand.u32 2147483647, %v2538
        %v2547 = vand.u32 2147483647, %v2539
        %v2548 = vand.u32 2147483647, %v2540
        %v2549 = vand.u32 2147483647, %v2469
        %v2550 = vand.u32 2147483647, %v2470
        %v2551 = vand.u32 2147483647, %v2471
        %v2552 = vand.u32 2147483647, %v2472
        %v2553 = vand.u32 2147483647, %v2473
        %v2554 = vand.u32 2147483647, %v2474
        %v2555 = vand.u32 2147483647, %v2475
        %v2556 = vand.u32 2147483647, %v2476
        %v2565 = vrot.slane %v2549, 4
        %v2566 = vrot.slane %v2550, 4
        %v2567 = vrot.slane %v2551, 4
        %v2568 = vrot.slane %v2552, 4
        %v2569 = vrot.slane %v2553, 4
        %v2570 = vrot.slane %v2554, 4
        %v2571 = vrot.slane %v2555, 4
        %v2572 = vrot.slane %v2556, 4
        %v2581 = vmax.f32 %v2541, %v2565
        %v2582 = vmax.f32 %v2542, %v2566
        %v2583 = vmax.f32 %v2543, %v2567
        %v2584 = vmax.f32 %v2544, %v2568
        %v2585 = vmax.f32 %v2545, %v2569
        %v2586 = vmax.f32 %v2546, %v2570
        %v2587 = vmax.f32 %v2547, %v2571
        %v2588 = vmax.f32 %v2548, %v2572
        %v2589 = vmin.f32 %v2541, %v2565
        %v2590 = vmin.f32 %v2542, %v2566
        %v2591 = vmin.f32 %v2543, %v2567
        %v2592 = vmin.f32 %v2544, %v2568
        %v2593 = vmin.f32 %v2545, %v2569
        %v2594 = vmin.f32 %v2546, %v2570
        %v2595 = vmin.f32 %v2547, %v2571
        %v2596 = vmin.f32 %v2548, %v2572
        %v2597 = vmax.f32 %v2581, 1e-06
        %v2598 = vmax.f32 %v2582, 1e-06
        %v2599 = vmax.f32 %v2583, 1e-06
        %v2600 = vmax.f32 %v2584, 1e-06
        %v2601 = vmax.f32 %v2585, 1e-06
        %v2602 = vmax.f32 %v2586, 1e-06
        %v2603 = vmax.f32 %v2587, 1e-06
        %v2604 = vmax.f32 %v2588, 1e-06
        %v2605 = vrcp.pop %v2597
        %v2606 = vrcp.pop %v2598
        %v2607 = vrcp.pop %v2599
        %v2608 = vrcp.pop %v2600
        %v2609 = vrcp.pop %v2601
        %v2610 = vrcp.pop %v2602
        %v2611 = vrcp.pop %v2603
        %v2612 = vrcp.pop %v2604
        %v2613 = vmul.f32 %v2589, %v2605
        %v2614 = vmul.f32 %v2590, %v2606
        %v2615 = vmul.f32 %v2591, %v2607
        %v2616 = vmul.f32 %v2592, %v2608
        %v2617 = vmul.f32 %v2593, %v2609
        %v2618 = vmul.f32 %v2594, %v2610
        %v2619 = vmul.f32 %v2595, %v2611
        %v2620 = vmul.f32 %v2596, %v2612
        %v2621 = vmul.f32 %v2613, %v2613
        %v2622 = vmul.f32 %v2614, %v2614
        %v2623 = vmul.f32 %v2615, %v2615
        %v2624 = vmul.f32 %v2616, %v2616
        %v2625 = vmul.f32 %v2617, %v2617
        %v2626 = vmul.f32 %v2618, %v2618
        %v2627 = vmul.f32 %v2619, %v2619
        %v2628 = vmul.f32 %v2620, %v2620
        %v2629 = vmul.f32 %v2621, -0.0117212
        %v2630 = vmul.f32 %v2622, -0.0117212
        %v2631 = vmul.f32 %v2623, -0.0117212
        %v2632 = vmul.f32 %v2624, -0.0117212
        %v2633 = vmul.f32 %v2625, -0.0117212
        %v2634 = vmul.f32 %v2626, -0.0117212
        %v2635 = vmul.f32 %v2627, -0.0117212
        %v2636 = vmul.f32 %v2628, -0.0117212
        %v2637 = vadd.f32 %v2629, 0.05265332
        %v2638 = vadd.f32 %v2630, 0.05265332
        %v2639 = vadd.f32 %v2631, 0.05265332
        %v2640 = vadd.f32 %v2632, 0.05265332
        %v2641 = vadd.f32 %v2633, 0.05265332
        %v2642 = vadd.f32 %v2634, 0.05265332
        %v2643 = vadd.f32 %v2635, 0.05265332
        %v2644 = vadd.f32 %v2636, 0.05265332
        %v2645 = vmul.f32 %v2637, %v2621
        %v2646 = vmul.f32 %v2638, %v2622
        %v2647 = vmul.f32 %v2639, %v2623
        %v2648 = vmul.f32 %v2640, %v2624
        %v2649 = vmul.f32 %v2641, %v2625
        %v2650 = vmul.f32 %v2642, %v2626
        %v2651 = vmul.f32 %v2643, %v2627
        %v2652 = vmul.f32 %v2644, %v2628
        %v2653 = vadd.f32 %v2645, -0.11643287
        %v2654 = vadd.f32 %v2646, -0.11643287
        %v2655 = vadd.f32 %v2647, -0.11643287
        %v2656 = vadd.f32 %v2648, -0.11643287
        %v2657 = vadd.f32 %v2649, -0.11643287
        %v2658 = vadd.f32 %v2650, -0.11643287
        %v2659 = vadd.f32 %v2651, -0.11643287
        %v2660 = vadd.f32 %v2652, -0.11643287
        %v2661 = vmul.f32 %v2653, %v2621
        %v2662 = vmul.f32 %v2654, %v2622
        %v2663 = vmul.f32 %v2655, %v2623
        %v2664 = vmul.f32 %v2656, %v2624
        %v2665 = vmul.f32 %v2657, %v2625
        %v2666 = vmul.f32 %v2658, %v2626
        %v2667 = vmul.f32 %v2659, %v2627
        %v2668 = vmul.f32 %v2660, %v2628
        %v2669 = vadd.f32 %v2661, 0.19354346
        %v2670 = vadd.f32 %v2662, 0.19354346
        %v2671 = vadd.f32 %v2663, 0.19354346
        %v2672 = vadd.f32 %v2664, 0.19354346
        %v2673 = vadd.f32 %v2665, 0.19354346
        %v2674 = vadd.f32 %v2666, 0.19354346
        %v2675 = vadd.f32 %v2667, 0.19354346
        %v2676 = vadd.f32 %v2668, 0.19354346
        %v2677 = vmul.f32 %v2669, %v2621
        %v2678 = vmul.f32 %v2670, %v2622
        %v2679 = vmul.f32 %v2671, %v2623
        %v2680 = vmul.f32 %v2672, %v2624
        %v2681 = vmul.f32 %v2673, %v2625
        %v2682 = vmul.f32 %v2674, %v2626
        %v2683 = vmul.f32 %v2675, %v2627
        %v2684 = vmul.f32 %v2676, %v2628
        %v2685 = vadd.f32 %v2677, -0.33262348
        %v2686 = vadd.f32 %v2678, -0.33262348
        %v2687 = vadd.f32 %v2679, -0.33262348
        %v2688 = vadd.f32 %v2680, -0.33262348
        %v2689 = vadd.f32 %v2681, -0.33262348
        %v2690 = vadd.f32 %v2682, -0.33262348
        %v2691 = vadd.f32 %v2683, -0.33262348
        %v2692 = vadd.f32 %v2684, -0.33262348
        %v2693 = vmul.f32 %v2685, %v2621
        %v2694 = vmul.f32 %v2686, %v2622
        %v2695 = vmul.f32 %v2687, %v2623
        %v2696 = vmul.f32 %v2688, %v2624
        %v2697 = vmul.f32 %v2689, %v2625
        %v2698 = vmul.f32 %v2690, %v2626
        %v2699 = vmul.f32 %v2691, %v2627
        %v2700 = vmul.f32 %v2692, %v2628
        %v2701 = vadd.f32 %v2693, 0.99997723
        %v2702 = vadd.f32 %v2694, 0.99997723
        %v2703 = vadd.f32 %v2695, 0.99997723
        %v2704 = vadd.f32 %v2696, 0.99997723
        %v2705 = vadd.f32 %v2697, 0.99997723
        %v2706 = vadd.f32 %v2698, 0.99997723
        %v2707 = vadd.f32 %v2699, 0.99997723
        %v2708 = vadd.f32 %v2700, 0.99997723
        %v2709 = vmul.f32 %v2613, %v2701
        %v2710 = vmul.f32 %v2614, %v2702
        %v2711 = vmul.f32 %v2615, %v2703
        %v2712 = vmul.f32 %v2616, %v2704
        %v2713 = vmul.f32 %v2617, %v2705
        %v2714 = vmul.f32 %v2618, %v2706
        %v2715 = vmul.f32 %v2619, %v2707
        %v2716 = vmul.f32 %v2620, %v2708
        %v2725 = vrot.slane %v2541, 4
        %v2726 = vrot.slane %v2542, 4
        %v2727 = vrot.slane %v2543, 4
        %v2728 = vrot.slane %v2544, 4
        %v2729 = vrot.slane %v2545, 4
        %v2730 = vrot.slane %v2546, 4
        %v2731 = vrot.slane %v2547, 4
        %v2732 = vrot.slane %v2548, 4
        %vm2741 = vcmp.gt.f32.partialorder %v2549, %v2725
        %vm2742 = vcmp.gt.f32.partialorder %v2550, %v2726
        %vm2743 = vcmp.gt.f32.partialorder %v2551, %v2727
        %vm2744 = vcmp.gt.f32.partialorder %v2552, %v2728
        %vm2745 = vcmp.gt.f32.partialorder %v2553, %v2729
        %vm2746 = vcmp.gt.f32.partialorder %v2554, %v2730
        %vm2747 = vcmp.gt.f32.partialorder %v2555, %v2731
        %vm2748 = vcmp.gt.f32.partialorder %v2556, %v2732
        %v2749 = vsub.f32 1.5707963, %v2709
        %v2750 = vsub.f32 1.5707963, %v2710
        %v2751 = vsub.f32 1.5707963, %v2711
        %v2752 = vsub.f32 1.5707963, %v2712
        %v2753 = vsub.f32 1.5707963, %v2713
        %v2754 = vsub.f32 1.5707963, %v2714
        %v2755 = vsub.f32 1.5707963, %v2715
        %v2756 = vsub.f32 1.5707963, %v2716
        %v2765 = vrot.slane %v2749, 4
        %v2766 = vrot.slane %v2750, 4
        %v2767 = vrot.slane %v2751, 4
        %v2768 = vrot.slane %v2752, 4
        %v2769 = vrot.slane %v2753, 4
        %v2770 = vrot.slane %v2754, 4
        %v2771 = vrot.slane %v2755, 4
        %v2772 = vrot.slane %v2756, 4
        %v2789 = vrot.slane %v2709, 4
        %v2790 = vrot.slane %v2710, 4
        %v2791 = vrot.slane %v2711, 4
        %v2792 = vrot.slane %v2712, 4
        %v2793 = vrot.slane %v2713, 4
        %v2794 = vrot.slane %v2714, 4
        %v2795 = vrot.slane %v2715, 4
        %v2796 = vrot.slane %v2716, 4
        %v2805 = vsel %vm2741, %v2765, %v2789
        %v2806 = vsel %vm2742, %v2766, %v2790
        %v2807 = vsel %vm2743, %v2767, %v2791
        %v2808 = vsel %vm2744, %v2768, %v2792
        %v2809 = vsel %vm2745, %v2769, %v2793
        %v2810 = vsel %vm2746, %v2770, %v2794
        %v2811 = vsel %vm2747, %v2771, %v2795
        %v2812 = vsel %vm2748, %v2772, %v2796
        %vm2813 = vcmp.lt.f32.partialorder %v2533, 0.0
        %vm2814 = vcmp.lt.f32.partialorder %v2534, 0.0
        %vm2815 = vcmp.lt.f32.partialorder %v2535, 0.0
        %vm2816 = vcmp.lt.f32.partialorder %v2536, 0.0
        %vm2817 = vcmp.lt.f32.partialorder %v2537, 0.0
        %vm2818 = vcmp.lt.f32.partialorder %v2538, 0.0
        %vm2819 = vcmp.lt.f32.partialorder %v2539, 0.0
        %vm2820 = vcmp.lt.f32.partialorder %v2540, 0.0
        %v2821 = vsub.f32 3.1415925, %v2805
        %v2822 = vsub.f32 3.1415925, %v2806
        %v2823 = vsub.f32 3.1415925, %v2807
        %v2824 = vsub.f32 3.1415925, %v2808
        %v2825 = vsub.f32 3.1415925, %v2809
        %v2826 = vsub.f32 3.1415925, %v2810
        %v2827 = vsub.f32 3.1415925, %v2811
        %v2828 = vsub.f32 3.1415925, %v2812
        %v2837 = vrot.slane %v2821, 4
        %v2838 = vrot.slane %v2822, 4
        %v2839 = vrot.slane %v2823, 4
        %v2840 = vrot.slane %v2824, 4
        %v2841 = vrot.slane %v2825, 4
        %v2842 = vrot.slane %v2826, 4
        %v2843 = vrot.slane %v2827, 4
        %v2844 = vrot.slane %v2828, 4
        %v2861 = vrot.slane %v2805, 4
        %v2862 = vrot.slane %v2806, 4
        %v2863 = vrot.slane %v2807, 4
        %v2864 = vrot.slane %v2808, 4
        %v2865 = vrot.slane %v2809, 4
        %v2866 = vrot.slane %v2810, 4
        %v2867 = vrot.slane %v2811, 4
        %v2868 = vrot.slane %v2812, 4
        %v2877 = vsel %vm2813, %v2837, %v2861
        %v2878 = vsel %vm2814, %v2838, %v2862
        %v2879 = vsel %vm2815, %v2839, %v2863
        %v2880 = vsel %vm2816, %v2840, %v2864
        %v2881 = vsel %vm2817, %v2841, %v2865
        %v2882 = vsel %vm2818, %v2842, %v2866
        %v2883 = vsel %vm2819, %v2843, %v2867
        %v2884 = vsel %vm2820, %v2844, %v2868
        %vm2885 = vcmp.lt.f32.partialorder %v2469, 0.0
        %vm2886 = vcmp.lt.f32.partialorder %v2470, 0.0
        %vm2887 = vcmp.lt.f32.partialorder %v2471, 0.0
        %vm2888 = vcmp.lt.f32.partialorder %v2472, 0.0
        %vm2889 = vcmp.lt.f32.partialorder %v2473, 0.0
        %vm2890 = vcmp.lt.f32.partialorder %v2474, 0.0
        %vm2891 = vcmp.lt.f32.partialorder %v2475, 0.0
        %vm2892 = vcmp.lt.f32.partialorder %v2476, 0.0
        %v2893 = vsub.f32 0.0, %v2877
        %v2894 = vsub.f32 0.0, %v2878
        %v2895 = vsub.f32 0.0, %v2879
        %v2896 = vsub.f32 0.0, %v2880
        %v2897 = vsub.f32 0.0, %v2881
        %v2898 = vsub.f32 0.0, %v2882
        %v2899 = vsub.f32 0.0, %v2883
        %v2900 = vsub.f32 0.0, %v2884
        %v2909 = vrot.slane %v2893, 4
        %v2910 = vrot.slane %v2894, 4
        %v2911 = vrot.slane %v2895, 4
        %v2912 = vrot.slane %v2896, 4
        %v2913 = vrot.slane %v2897, 4
        %v2914 = vrot.slane %v2898, 4
        %v2915 = vrot.slane %v2899, 4
        %v2916 = vrot.slane %v2900, 4
        %v2933 = vrot.slane %v2877, 4
        %v2934 = vrot.slane %v2878, 4
        %v2935 = vrot.slane %v2879, 4
        %v2936 = vrot.slane %v2880, 4
        %v2937 = vrot.slane %v2881, 4
        %v2938 = vrot.slane %v2882, 4
        %v2939 = vrot.slane %v2883, 4
        %v2940 = vrot.slane %v2884, 4
        %v2949 = vsel %vm2885, %v2909, %v2933
        %v2950 = vsel %vm2886, %v2910, %v2934
        %v2951 = vsel %vm2887, %v2911, %v2935
        %v2952 = vsel %vm2888, %v2912, %v2936
        %v2953 = vsel %vm2889, %v2913, %v2937
        %v2954 = vsel %vm2890, %v2914, %v2938
        %v2955 = vsel %vm2891, %v2915, %v2939
        %v2956 = vsel %vm2892, %v2916, %v2940
        %v2957 = vld [vmem:[#allocation2] sm:$0xc0]
        %v2958 = vld [vmem:[#allocation2 + $0x8] sm:$0xc0]
        %v2959 = vld [vmem:[#allocation2 + $0x10] sm:$0xc0]
        %v2960 = vld [vmem:[#allocation2 + $0x18] sm:$0xc0]
        %v2961 = vld [vmem:[#allocation2 + $0x20] sm:$0xc0]
        %v2962 = vld [vmem:[#allocation2 + $0x28] sm:$0xc0]
        %v2963 = vld [vmem:[#allocation2 + $0x30] sm:$0xc0]
        %v2964 = vld [vmem:[#allocation2 + $0x38] sm:$0xc0]
        %v2965 = vld [vmem:[#allocation2] sm:$0x30]
        %v2966 = vld [vmem:[#allocation2 + $0x8] sm:$0x30]
        %v2967 = vld [vmem:[#allocation2 + $0x10] sm:$0x30]
        %v2968 = vld [vmem:[#allocation2 + $0x18] sm:$0x30]
        %v2969 = vld [vmem:[#allocation2 + $0x20] sm:$0x30]
        %v2970 = vld [vmem:[#allocation2 + $0x28] sm:$0x30]
        %v2971 = vld [vmem:[#allocation2 + $0x30] sm:$0x30]
        %v2972 = vld [vmem:[#allocation2 + $0x38] sm:$0x30]
        %v2981 = vrot.slane %v2965, 6
        %v2982 = vrot.slane %v2966, 6
        %v2983 = vrot.slane %v2967, 6
        %v2984 = vrot.slane %v2968, 6
        %v2985 = vrot.slane %v2969, 6
        %v2986 = vrot.slane %v2970, 6
        %v2987 = vrot.slane %v2971, 6
        %v2988 = vrot.slane %v2972, 6
        %vm2997 = vcmp.gt.f32.partialorder %v2957, %v2981
        %vm2998 = vcmp.gt.f32.partialorder %v2958, %v2982
        %vm2999 = vcmp.gt.f32.partialorder %v2959, %v2983
        %vm3000 = vcmp.gt.f32.partialorder %v2960, %v2984
        %vm3001 = vcmp.gt.f32.partialorder %v2961, %v2985
        %vm3002 = vcmp.gt.f32.partialorder %v2962, %v2986
        %vm3003 = vcmp.gt.f32.partialorder %v2963, %v2987
        %vm3004 = vcmp.gt.f32.partialorder %v2964, %v2988
        %v3013 = vrot.slane %v2949, 6
        %v3014 = vrot.slane %v2950, 6
        %v3015 = vrot.slane %v2951, 6
        %v3016 = vrot.slane %v2952, 6
        %v3017 = vrot.slane %v2953, 6
        %v3018 = vrot.slane %v2954, 6
        %v3019 = vrot.slane %v2955, 6
        %v3020 = vrot.slane %v2956, 6
        %v3029 = vsel %vm2997, %v2949, %v3013
        %v3030 = vsel %vm2998, %v2950, %v3014
        %v3031 = vsel %vm2999, %v2951, %v3015
        %v3032 = vsel %vm3000, %v2952, %v3016
        %v3033 = vsel %vm3001, %v2953, %v3017
        %v3034 = vsel %vm3002, %v2954, %v3018
        %v3035 = vsel %vm3003, %v2955, %v3019
        %v3036 = vsel %vm3004, %v2956, %v3020
        %v3045 = vrot.slane %v3029, 6
        %v3046 = vrot.slane %v3030, 6
        %v3047 = vrot.slane %v3031, 6
        %v3048 = vrot.slane %v3032, 6
        %v3049 = vrot.slane %v3033, 6
        %v3050 = vrot.slane %v3034, 6
        %v3051 = vrot.slane %v3035, 6
        %v3052 = vrot.slane %v3036, 6
        %3061 = vst [vmem:[%s347 + $0x80] sm:$0x3] %v3045
        %3062 = vst [vmem:[%s347 + $0x88] sm:$0x3] %v3046
        %3063 = vst [vmem:[%s347 + $0x90] sm:$0x3] %v3047
        %3064 = vst [vmem:[%s347 + $0x98] sm:$0x3] %v3048
        %3065 = vst [vmem:[%s347 + $0xa0] sm:$0x3] %v3049
        %3066 = vst [vmem:[%s347 + $0xa8] sm:$0x3] %v3050
        %3067 = vst [vmem:[%s347 + $0xb0] sm:$0x3] %v3051
        %3068 = vst [vmem:[%s347 + $0xb8] sm:$0x3] %v3052
        %s3069 = sand.u32 %s164, 1
        %s3070 = scalar_lea.sflag [#allocation5], %s3069
        %s3071 = sand.u32 %s164, 1
        %s3072 = smul.addr %s3071, 192
        %s3073 = scalar_lea.vmem [#allocation4], %s3072
        // Predicated region
        $region68: #{tpu_custom_call.1} parent=62 // pred_check
          %p3074 = pneg %p174
        $region69: #{tpu_custom_call.1} parent=62 // pred_check_branch
          %3076 = sbr.rel (%p3074) target = $region71
        $region70: #{tpu_custom_call.1} parent=62 // pred_region
          %s3077 = smul.u32 8, %s20
          %s3079 = ssub.s32 3072, 3072
          %3080 = vsyncadd %s3070, %s3079
          %s3081 = smul.addr %s3077, 128
          %s3082 = scalar_lea.hbm %s6, %s3081
          %s3083 = sshll.u32 %s3073, 4
          %s3084 = int_to_ptr.vmem [resolvable:$true] %s3083
          %3089 = dma.vmem_to_hbm [thread:$0]  %s3084, 3072, %s3082, %s3070, 1024, 2048, 64
        $region71: #{tpu_custom_call.1} parent=62 // pred_fallthru
          _
      $region63: #{tpu_custom_call.1} parent=5 // pred_fallthru
        _
      %p3090 = scmp.le.s32.totalorder 2, %s15
      // Predicated region
      $region72: #{tpu_custom_call.1} parent=5 // pred_check
        %p3091 = pneg %p3090
      $region73: #{tpu_custom_call.1} parent=5 // pred_check_branch
        %3093 = sbr.rel (%p3091) target = $region75
      $region74: #{tpu_custom_call.1} parent=5 // pred_region
        %s3094 = ssub.s32 %s15, 2
        // Predicated region
        $region76: #{tpu_custom_call.1} parent=74 // pred_check
          %p3095 = pneg %p180
        $region77: #{tpu_custom_call.1} parent=74 // pred_check_branch
          %3097 = sbr.rel (%p3095) target = $region79
        $region78: #{tpu_custom_call.1} parent=74 // pred_region
          %s3098 = sand.u32 %s165, 1
          %s3099 = scalar_lea.sflag [#allocation5], %s3098
          %s3100 = sand.u32 %s165, 1
          %s3101 = smul.addr %s3100, 192
          %s3102 = scalar_lea.vmem [#allocation4], %s3101
          %3103 = dma.done %s3099, 3072
        $region79: #{tpu_custom_call.1} parent=74 // pred_fallthru
          _
      $region75: #{tpu_custom_call.1} parent=5 // pred_fallthru
        _
    $region6: #{tpu_custom_call.1} parent=1 // loop_footer
      %s19 = sadd.s32 1, %s15
    $region7: #{tpu_custom_call.1} parent=1 // loop_footer_branch
      %14 = sbr.rel target = $region3
    $region8: #{tpu_custom_call.1} parent=1 // loop_exit
      _
    %3104 = vsyncpa [#allocation5], 1
    %s3105 = scalar_lea.sflag [#allocation5], 1
    %3106 = vsyncpa %s3105, 1

</llo_original>
